<compile_context>
chip_gen: v7x
topology: tpu7x:2x2x1
jax: 0.10.0
libtpu: 0.0.40
codegen_flags: <defaults>
</compile_context>

<pallas_src>
import jax
import jax.numpy as jnp
from jax import lax
from jax.experimental import pallas as pl
from jax.experimental.pallas import tpu as pltpu

KH = KW = 3        # depthwise kernel size
LANE = 128         # TPU lane width
SUBLANE = 8        # TPU sublane width
ROW_CHUNK = 8      # output rows per inner depthwise+matmul chunk


def _round_up(v, m):
    return (v + m - 1) // m * m


def _make_kernel(TH, WA, Cp, Cop, n_row_tiles):
    """Kernel factory closing over the static tile sizes."""
    SH = TH + KH - 1          # strip height (with halo rows)

    def kernel(x_hbm, dw_ref, pw_ref, b_ref, o_ref, buf, sem):
        # x_hbm:  (N, Hp, Wp, Cp)    full padded input, left in HBM (pl.ANY)
        # dw_ref: (KH, KW, Cp)       depthwise taps (whole array in VMEM, single copy)
        # pw_ref: (Cp, Cop)          pointwise matrix (whole array in VMEM)
        # b_ref:  (1, Cop) f32       fused (depthwise+pointwise) bias
        # o_ref:  (1, TH, WA, Cop)   output row-tile
        # buf:    (2, SH, Wp, Cp)    double-buffered VMEM halo strips
        # sem:    (2,) DMA semaphores
        n = pl.program_id(0)
        r = pl.program_id(1)

        def strip_copy(batch, row_tile, slot):
            row0 = pl.multiple_of(row_tile * TH, TH)
            return pltpu.make_async_copy(
                x_hbm.at[batch, pl.ds(row0, SH)],   # (SH, Wp, Cp) strip in HBM
                buf.at[slot],
                sem.at[slot])

        slot = r % 2

        # First strip of this image: nothing was prefetched yet, fetch it now.
        @pl.when(r == 0)
        def _():
            strip_copy(n, 0, 0).start()

        # Wait for the strip belonging to this step (prefetched last step, or just issued).
        strip_copy(n, r, slot).wait()

        # Prefetch the next strip of this image while computing on the current one.
        @pl.when(r + 1 < n_row_tiles)
        def _():
            strip_copy(n, r + 1, 1 - slot).start()

        # Weights: hoisted once per grid step (channels on lanes).
        dw = dw_ref[...]                                    # (KH, KW, Cp), compute dtype
        taps = [[dw[kh, kw] for kw in range(KW)] for kh in range(KH)]
        pw = pw_ref[...]                                    # (Cp, Cop), compute dtype
        b = b_ref[...].astype(jnp.float32)                  # (1, Cop)

        # Process the row tile in small chunks so the depthwise accumulator stays in
        # registers / small VMEM temporaries even for large TH.
        for c0 in range(0, TH, ROW_CHUNK):
            rc = min(ROW_CHUNK, TH - c0)
            # Only these 3 width-shifted loads touch a non-8-aligned sublane offset;
            # the per-tap row (kh) shifts below are leading-dim slices and are free.
            xw = [buf[slot, c0:c0 + rc + (KH - 1), kw:kw + WA, :] for kw in range(KW)]

            acc = xw[0][0:rc] * taps[0][0]
            for kh in range(KH):
                for kw in range(KW):
                    if kh == 0 and kw == 0:
                        continue
                    acc = acc + xw[kw][kh:kh + rc] * taps[kh][kw]

            # (rc, WA, Cp) -> (rc*WA, Cp) is layout preserving (WA % 8 == 0, Cp % 128 == 0).
            y = acc.reshape(rc * WA, Cp)
            # Operands fed to the MXU in their native (f32 or bf16) dtype, f32 accumulate.
            out = jnp.dot(y, pw, preferred_element_type=jnp.float32) + b
            o_ref[0, c0:c0 + rc] = out.reshape(rc, WA, Cop).astype(o_ref.dtype)

    return kernel


def deepwise_pointwise_conv(x_nchw, dw_w, dw_b, pw_w, pw_b, *,
                            row_tile_max=32, compute_dtype=None):
    """x_nchw: (N, C, H, W)
       dw_w:   (C, 1, KH, KW)   depthwise Conv2d weight (PyTorch layout)
       dw_b:   (C,)
       pw_w:   (Cout, C, 1, 1)  pointwise Conv2d weight (PyTorch layout)
       pw_b:   (Cout,)
       compute_dtype: None (= input dtype) or jnp.bfloat16 for the low-precision path.
       returns (N, Cout, H-2, W-2), matching the PyTorch NCHW output."""
    N, C, H, W = x_nchw.shape
    Cout = pw_w.shape[0]
    Ho, Wo = H - (KH - 1), W - (KW - 1)
    assert Ho > 0 and Wo > 0

    out_dtype = x_nchw.dtype
    cdtype = out_dtype if compute_dtype is None else compute_dtype
    esize = jnp.dtype(cdtype).itemsize
    out_esize = jnp.dtype(out_dtype).itemsize

    # Static padded sizes: channels on the 128-wide lane axis, width 8-aligned.
    Cp = _round_up(C, LANE)
    Cop = _round_up(Cout, LANE)
    WA = _round_up(Wo, SUBLANE)                 # accumulator / output width
    Wp = _round_up(WA + (KW - 1), SUBLANE)      # DMA strip width (sublane aligned)

    # Generation-aware VMEM budget (v7x ~64 MiB/core, v5e/v6e 128 MiB).
    try:
        cap = pltpu.get_tpu_info().vmem_capacity_bytes
        budget = min(int(cap * 0.7), 96 * 1024 * 1024)
    except Exception:
        budget = 40 * 1024 * 1024
    budget = max(budget, 16 * 1024 * 1024)

    def vmem_need(th):
        strips = 2 * (th + KH - 1) * Wp * Cp * esize          # double-buffered halo strips
        outblk = 2 * th * WA * Cop * out_esize                # double-buffered output block
        weights = (KH * KW * Cp + Cp * Cop) * esize + Cop * 4 # single-buffered constants
        return strips + outblk + weights + 4 * 1024 * 1024    # compiler scratch slack

    if Ho >= SUBLANE:
        TH = min(_round_up(row_tile_max, SUBLANE), _round_up(Ho, SUBLANE))
        while TH > SUBLANE and vmem_need(TH) > budget:
            TH -= SUBLANE
    else:
        TH = Ho
    nT = pl.cdiv(Ho, TH)
    Ho_pad = nT * TH
    Hp = Ho_pad + (KH - 1)

    # ---- wrapper glue: NCHW -> padded NHWC, PyTorch weight repacking ----
    # TODO(synk): for repeated inference calls, hoist these transposes/pads (accept NHWC
    # + pre-packed weights at the API boundary) so the padded HBM copy is not paid per call.
    x_nhwc = jnp.transpose(x_nchw, (0, 2, 3, 1)).astype(cdtype)          # (N, H, W, C)
    x_nhwc = jnp.pad(x_nhwc, ((0, 0), (0, Hp - H), (0, Wp - W), (0, Cp - C)))

    dw = jnp.transpose(dw_w[:, 0, :, :], (1, 2, 0))                      # (KH, KW, C)
    dw = jnp.pad(dw, ((0, 0), (0, 0), (0, Cp - C))).astype(cdtype)
    pw_mat = jnp.transpose(pw_w[:, :, 0, 0], (1, 0))                     # (C, Cout)
    pw_pad = jnp.pad(pw_mat, ((0, Cp - C), (0, Cop - Cout)))             # (Cp, Cop) f32
    # Fold the depthwise bias through the pointwise projection (exact in real arithmetic).
    fused_b = (jnp.pad(pw_b, (0, Cop - Cout))
               + jnp.pad(dw_b, (0, Cp - C)) @ pw_pad).reshape(1, Cop).astype(jnp.float32)
    pw_pad = pw_pad.astype(cdtype)

    kernel = _make_kernel(TH, WA, Cp, Cop, nT)

    flops = 2 * N * Ho_pad * WA * Cp * (KH * KW + Cop)
    bytes_acc = (N * nT * (TH + KH - 1) * Wp * Cp * esize                # halo strip reads
                 + N * Ho_pad * WA * Cop * out_esize                     # output writes
                 + (KH * KW * Cp + Cp * Cop) * esize + Cop * 4)          # weights / bias

    out_padded = pl.pallas_call(
        kernel,
        out_shape=jax.ShapeDtypeStruct((N, Ho_pad, WA, Cop), out_dtype),
        grid_spec=pltpu.PrefetchScalarGridSpec(
            num_scalar_prefetch=0,
            grid=(N, nT),
            in_specs=[
                pl.BlockSpec(memory_space=pl.ANY),                       # x stays in HBM
                pl.BlockSpec(memory_space=pltpu.MemorySpace.VMEM),       # dw (single copy)
                pl.BlockSpec(memory_space=pltpu.MemorySpace.VMEM),       # pw (single copy)
                pl.BlockSpec(memory_space=pltpu.MemorySpace.VMEM),       # fused bias
            ],
            out_specs=pl.BlockSpec((1, TH, WA, Cop), lambda n, r: (n, r, 0, 0)),
            scratch_shapes=[
                pltpu.VMEM((2, TH + KH - 1, Wp, Cp), cdtype),            # halo strips
                pltpu.SemaphoreType.DMA((2,)),
            ],
        ),
        compiler_params=pltpu.CompilerParams(
            dimension_semantics=("parallel", "arbitrary"),
            vmem_limit_bytes=budget,
        ),
        cost_estimate=pl.CostEstimate(
            flops=flops, transcendentals=0, bytes_accessed=bytes_acc),
    )(x_nhwc, dw, pw_pad, fused_b)

    out_nhwc = out_padded[:, :Ho, :Wo, :Cout]
    return jnp.transpose(out_nhwc, (0, 3, 1, 2))                         # back to NCHW


def _reference(x_nchw, dw_w, dw_b, pw_w, pw_b):
    C = x_nchw.shape[1]
    dn = ("NCHW", "OIHW", "NCHW")
    y = lax.conv_general_dilated(x_nchw, dw_w, (1, 1), "VALID",
                                 feature_group_count=C, dimension_numbers=dn)
    y = y + dw_b.reshape(1, -1, 1, 1)
    z = lax.conv_general_dilated(y, pw_w, (1, 1), "VALID",
                                 dimension_numbers=dn)
    return z + pw_b.reshape(1, -1, 1, 1)


if __name__ == "__main__":
    N, C, H, W = 2, 4, 16, 16
    Cout = 8

    key = jax.random.PRNGKey(0)
    kx, k1, k2, k3, k4 = jax.random.split(key, 5)
    x = jax.random.normal(kx, (N, C, H, W), jnp.float32)
    dw_w = 0.1 * jax.random.normal(k1, (C, 1, KH, KW), jnp.float32)
    dw_b = 0.1 * jax.random.normal(k2, (C,), jnp.float32)
    pw_w = 0.1 * jax.random.normal(k3, (Cout, C, 1, 1), jnp.float32)
    pw_b = 0.1 * jax.random.normal(k4, (Cout,), jnp.float32)

    out = deepwise_pointwise_conv(x, dw_w, dw_b, pw_w, pw_b)
    out = jax.block_until_ready(out)

    ref = _reference(x, dw_w, dw_b, pw_w, pw_b)
    assert out.shape == (N, Cout, H - 2, W - 2)
    assert jnp.allclose(out, ref, atol=1e-4, rtol=1e-4)
    print("KERNEL_OK")
</pallas_src>

<mosaic_0001>
module attributes {stable_mosaic.version = 11 : i64} {
  func.func @kernel(%arg0: i32, %arg1: i32, %arg2: memref<2x18x24x128xf32, #tpu.memory_space<any>>, %arg3: memref<3x3x128xf32, #tpu.memory_space<vmem>>, %arg4: memref<128x128xf32, #tpu.memory_space<vmem>>, %arg5: memref<1x128xf32, #tpu.memory_space<vmem>>, %arg6: memref<1x16x16x128xf32, #tpu.memory_space<vmem>>, %arg7: memref<2x18x24x128xf32, #tpu.memory_space<vmem>>, %arg8: memref<2x!tpu.dma_semaphore, #tpu.memory_space<semaphore_mem>>) attributes {dimension_semantics = [#tpu.dimension_semantics<parallel>, #tpu.dimension_semantics<arbitrary>], iteration_bounds = array<i64: 2, 1>, scalar_prefetch = 0 : i64, scratch_operands = 2 : i64, tpu.core_type = #tpu.core_type<tc>, window_params = [{}, {pipeline_mode = #tpu.pipeline_mode<synchronous>, transform_indices = @transform_1, window_bounds = array<i64: 3, 3, 128>}, {pipeline_mode = #tpu.pipeline_mode<synchronous>, transform_indices = @transform_2, window_bounds = array<i64: 128, 128>}, {pipeline_mode = #tpu.pipeline_mode<synchronous>, transform_indices = @transform_3, window_bounds = array<i64: 1, 128>}, {transform_indices = @transform_4, window_bounds = array<i64: 1, 16, 16, 128>}]} {
    %c2_i32 = arith.constant 2 : i32
    %c0_i32 = arith.constant 0 : i32
    %0 = arith.cmpi eq, %c2_i32, %c0_i32 : i32
    %c1_i32 = arith.constant 1 : i32
    %1 = arith.select %0, %c1_i32, %c2_i32 : i32
    %2 = arith.remsi %arg1, %1 : i32
    %c0_i32_0 = arith.constant 0 : i32
    %3 = arith.cmpi ne, %2, %c0_i32_0 : i32
    %c0_i32_1 = arith.constant 0 : i32
    %4 = arith.cmpi slt, %2, %c0_i32_1 : i32
    %c0_i32_2 = arith.constant 0 : i32
    %5 = arith.cmpi slt, %1, %c0_i32_2 : i32
    %6 = arith.xori %4, %5 : i1
    %7 = arith.andi %6, %3 : i1
    %8 = arith.addi %2, %1 : i32
    %9 = arith.select %7, %8, %2 : i32
    %c0_i32_3 = arith.constant 0 : i32
    %10 = arith.cmpi eq, %arg1, %c0_i32_3 : i32
    %11 = arith.extui %10 : i1 to i32
    %c0_i32_4 = arith.constant 0 : i32
    %12 = arith.cmpi ne, %11, %c0_i32_4 : i32
    scf.if %12 {
      %c0_i32_43 = arith.constant 0 : i32
      %168 = tpu.assume_multiple %c0_i32_43, 16 : i32
      %c0_i32_44 = arith.constant 0 : i32
      %c0_i32_45 = arith.constant 0 : i32
      %c0_i32_46 = arith.constant 0 : i32
      %c0_i32_47 = arith.constant 0 : i32
      %169 = tpu.memref_slice %arg2[%arg0, %168, %c0_i32_46, %c0_i32_47] : memref<2x18x24x128xf32, #tpu.memory_space<any>> -> memref<1x18x24x128xf32, #tpu.memory_space<any>>
      %170 = tpu.memref_squeeze %169 : memref<1x18x24x128xf32, #tpu.memory_space<any>> -> memref<18x24x128xf32, #tpu.memory_space<any>>
      %c0_i32_48 = arith.constant 0 : i32
      %c0_i32_49 = arith.constant 0 : i32
      %c0_i32_50 = arith.constant 0 : i32
      %171 = tpu.memref_slice %arg7[%c0_i32_44, %c0_i32_48, %c0_i32_49, %c0_i32_50] : memref<2x18x24x128xf32, #tpu.memory_space<vmem>> -> memref<1x18x24x128xf32, #tpu.memory_space<vmem>>
      %172 = tpu.memref_squeeze %171 : memref<1x18x24x128xf32, #tpu.memory_space<vmem>> -> memref<18x24x128xf32, #tpu.memory_space<vmem>>
      %173 = tpu.memref_slice %arg8[%c0_i32_45] : memref<2x!tpu.dma_semaphore, #tpu.memory_space<semaphore_mem>> -> memref<1x!tpu.dma_semaphore, #tpu.memory_space<semaphore_mem>>
      %174 = tpu.memref_squeeze %173 : memref<1x!tpu.dma_semaphore, #tpu.memory_space<semaphore_mem>> -> memref<!tpu.dma_semaphore, #tpu.memory_space<semaphore_mem>>
      tpu.enqueue_dma source(%170 : memref<18x24x128xf32, #tpu.memory_space<any>>) target(%172 : memref<18x24x128xf32, #tpu.memory_space<vmem>>) target_semaphore(%174 : memref<!tpu.dma_semaphore, #tpu.memory_space<semaphore_mem>>)
    } else {
    }
    %c16_i32 = arith.constant 16 : i32
    %13 = arith.muli %arg1, %c16_i32 : i32
    %14 = tpu.assume_multiple %13, 16 : i32
    %c0_i32_5 = arith.constant 0 : i32
    %c0_i32_6 = arith.constant 0 : i32
    %15 = tpu.memref_slice %arg2[%arg0, %14, %c0_i32_5, %c0_i32_6] : memref<2x18x24x128xf32, #tpu.memory_space<any>> -> memref<1x18x24x128xf32, #tpu.memory_space<any>>
    %16 = tpu.memref_squeeze %15 : memref<1x18x24x128xf32, #tpu.memory_space<any>> -> memref<18x24x128xf32, #tpu.memory_space<any>>
    %c0_i32_7 = arith.constant 0 : i32
    %c0_i32_8 = arith.constant 0 : i32
    %c0_i32_9 = arith.constant 0 : i32
    %17 = tpu.memref_slice %arg7[%9, %c0_i32_7, %c0_i32_8, %c0_i32_9] : memref<2x18x24x128xf32, #tpu.memory_space<vmem>> -> memref<1x18x24x128xf32, #tpu.memory_space<vmem>>
    %18 = tpu.memref_squeeze %17 : memref<1x18x24x128xf32, #tpu.memory_space<vmem>> -> memref<18x24x128xf32, #tpu.memory_space<vmem>>
    %19 = tpu.memref_slice %arg8[%9] : memref<2x!tpu.dma_semaphore, #tpu.memory_space<semaphore_mem>> -> memref<1x!tpu.dma_semaphore, #tpu.memory_space<semaphore_mem>>
    %20 = tpu.memref_squeeze %19 : memref<1x!tpu.dma_semaphore, #tpu.memory_space<semaphore_mem>> -> memref<!tpu.dma_semaphore, #tpu.memory_space<semaphore_mem>>
    tpu.wait_dma2 semaphore(%20 : memref<!tpu.dma_semaphore, #tpu.memory_space<semaphore_mem>>) src(%16 : memref<18x24x128xf32, #tpu.memory_space<any>>) dst(%18 : memref<18x24x128xf32, #tpu.memory_space<vmem>>)
    %c1_i32_10 = arith.constant 1 : i32
    %21 = arith.addi %arg1, %c1_i32_10 : i32
    %c1_i32_11 = arith.constant 1 : i32
    %22 = arith.cmpi slt, %21, %c1_i32_11 : i32
    %23 = arith.extui %22 : i1 to i32
    %c0_i32_12 = arith.constant 0 : i32
    %24 = arith.cmpi ne, %23, %c0_i32_12 : i32
    scf.if %24 {
      %c1_i32_43 = arith.constant 1 : i32
      %168 = arith.addi %arg1, %c1_i32_43 : i32
      %c1_i32_44 = arith.constant 1 : i32
      %169 = arith.subi %c1_i32_44, %9 : i32
      %c16_i32_45 = arith.constant 16 : i32
      %170 = arith.muli %168, %c16_i32_45 : i32
      %171 = tpu.assume_multiple %170, 16 : i32
      %c0_i32_46 = arith.constant 0 : i32
      %c0_i32_47 = arith.constant 0 : i32
      %172 = tpu.memref_slice %arg2[%arg0, %171, %c0_i32_46, %c0_i32_47] : memref<2x18x24x128xf32, #tpu.memory_space<any>> -> memref<1x18x24x128xf32, #tpu.memory_space<any>>
      %173 = tpu.memref_squeeze %172 : memref<1x18x24x128xf32, #tpu.memory_space<any>> -> memref<18x24x128xf32, #tpu.memory_space<any>>
      %c0_i32_48 = arith.constant 0 : i32
      %c0_i32_49 = arith.constant 0 : i32
      %c0_i32_50 = arith.constant 0 : i32
      %174 = tpu.memref_slice %arg7[%169, %c0_i32_48, %c0_i32_49, %c0_i32_50] : memref<2x18x24x128xf32, #tpu.memory_space<vmem>> -> memref<1x18x24x128xf32, #tpu.memory_space<vmem>>
      %175 = tpu.memref_squeeze %174 : memref<1x18x24x128xf32, #tpu.memory_space<vmem>> -> memref<18x24x128xf32, #tpu.memory_space<vmem>>
      %176 = tpu.memref_slice %arg8[%169] : memref<2x!tpu.dma_semaphore, #tpu.memory_space<semaphore_mem>> -> memref<1x!tpu.dma_semaphore, #tpu.memory_space<semaphore_mem>>
      %177 = tpu.memref_squeeze %176 : memref<1x!tpu.dma_semaphore, #tpu.memory_space<semaphore_mem>> -> memref<!tpu.dma_semaphore, #tpu.memory_space<semaphore_mem>>
      tpu.enqueue_dma source(%173 : memref<18x24x128xf32, #tpu.memory_space<any>>) target(%175 : memref<18x24x128xf32, #tpu.memory_space<vmem>>) target_semaphore(%177 : memref<!tpu.dma_semaphore, #tpu.memory_space<semaphore_mem>>)
    } else {
    }
    %c0 = arith.constant 0 : index
    %c0_13 = arith.constant 0 : index
    %c0_14 = arith.constant 0 : index
    %25 = vector.load %arg3[%c0, %c0_13, %c0_14] : memref<3x3x128xf32, #tpu.memory_space<vmem>>, vector<3x3x128xf32>
    %26 = vector.extract_strided_slice %25 {offsets = [0, 0, 0], sizes = [1, 1, 128], strides = [1, 1, 1]} : vector<3x3x128xf32> to vector<1x1x128xf32>
    %27 = vector.shape_cast %26 : vector<1x1x128xf32> to vector<128xf32>
    %28 = vector.extract_strided_slice %25 {offsets = [0, 1, 0], sizes = [1, 1, 128], strides = [1, 1, 1]} : vector<3x3x128xf32> to vector<1x1x128xf32>
    %29 = vector.shape_cast %28 : vector<1x1x128xf32> to vector<128xf32>
    %30 = vector.extract_strided_slice %25 {offsets = [0, 2, 0], sizes = [1, 1, 128], strides = [1, 1, 1]} : vector<3x3x128xf32> to vector<1x1x128xf32>
    %31 = vector.shape_cast %30 : vector<1x1x128xf32> to vector<128xf32>
    %32 = vector.extract_strided_slice %25 {offsets = [1, 0, 0], sizes = [1, 1, 128], strides = [1, 1, 1]} : vector<3x3x128xf32> to vector<1x1x128xf32>
    %33 = vector.shape_cast %32 : vector<1x1x128xf32> to vector<128xf32>
    %34 = vector.extract_strided_slice %25 {offsets = [1, 1, 0], sizes = [1, 1, 128], strides = [1, 1, 1]} : vector<3x3x128xf32> to vector<1x1x128xf32>
    %35 = vector.shape_cast %34 : vector<1x1x128xf32> to vector<128xf32>
    %36 = vector.extract_strided_slice %25 {offsets = [1, 2, 0], sizes = [1, 1, 128], strides = [1, 1, 1]} : vector<3x3x128xf32> to vector<1x1x128xf32>
    %37 = vector.shape_cast %36 : vector<1x1x128xf32> to vector<128xf32>
    %38 = vector.extract_strided_slice %25 {offsets = [2, 0, 0], sizes = [1, 1, 128], strides = [1, 1, 1]} : vector<3x3x128xf32> to vector<1x1x128xf32>
    %39 = vector.shape_cast %38 : vector<1x1x128xf32> to vector<128xf32>
    %40 = vector.extract_strided_slice %25 {offsets = [2, 1, 0], sizes = [1, 1, 128], strides = [1, 1, 1]} : vector<3x3x128xf32> to vector<1x1x128xf32>
    %41 = vector.shape_cast %40 : vector<1x1x128xf32> to vector<128xf32>
    %42 = vector.extract_strided_slice %25 {offsets = [2, 2, 0], sizes = [1, 1, 128], strides = [1, 1, 1]} : vector<3x3x128xf32> to vector<1x1x128xf32>
    %43 = vector.shape_cast %42 : vector<1x1x128xf32> to vector<128xf32>
    %c0_15 = arith.constant 0 : index
    %c0_16 = arith.constant 0 : index
    %44 = vector.load %arg4[%c0_15, %c0_16] : memref<128x128xf32, #tpu.memory_space<vmem>>, vector<128x128xf32>
    %c0_17 = arith.constant 0 : index
    %c0_18 = arith.constant 0 : index
    %45 = vector.load %arg5[%c0_17, %c0_18] : memref<1x128xf32, #tpu.memory_space<vmem>>, vector<1x128xf32>
    %46 = arith.index_cast %9 : i32 to index
    %c0_19 = arith.constant 0 : index
    %c0_20 = arith.constant 0 : index
    %c0_21 = arith.constant 0 : index
    %47 = vector.load %arg7[%46, %c0_19, %c0_20, %c0_21] : memref<2x18x24x128xf32, #tpu.memory_space<vmem>>, vector<1x10x16x128xf32>
    %48 = vector.shape_cast %47 : vector<1x10x16x128xf32> to vector<10x16x128xf32>
    %49 = arith.index_cast %9 : i32 to index
    %c0_22 = arith.constant 0 : index
    %c1 = arith.constant 1 : index
    %c0_23 = arith.constant 0 : index
    %50 = vector.load %arg7[%49, %c0_22, %c1, %c0_23] : memref<2x18x24x128xf32, #tpu.memory_space<vmem>>, vector<1x10x16x128xf32>
    %51 = vector.shape_cast %50 : vector<1x10x16x128xf32> to vector<10x16x128xf32>
    %52 = arith.index_cast %9 : i32 to index
    %c0_24 = arith.constant 0 : index
    %c2 = arith.constant 2 : index
    %c0_25 = arith.constant 0 : index
    %53 = vector.load %arg7[%52, %c0_24, %c2, %c0_25] : memref<2x18x24x128xf32, #tpu.memory_space<vmem>>, vector<1x10x16x128xf32>
    %54 = vector.shape_cast %53 : vector<1x10x16x128xf32> to vector<10x16x128xf32>
    %55 = vector.extract_strided_slice %48 {offsets = [0, 0, 0], sizes = [8, 16, 128], strides = [1, 1, 1]} : vector<10x16x128xf32> to vector<8x16x128xf32>
    %56 = vector.shape_cast %27 : vector<128xf32> to vector<1x1x128xf32>
    %57 = vector.broadcast %56 : vector<1x1x128xf32> to vector<8x16x128xf32>
    %58 = arith.mulf %55, %57 : vector<8x16x128xf32>
    %59 = vector.extract_strided_slice %51 {offsets = [0, 0, 0], sizes = [8, 16, 128], strides = [1, 1, 1]} : vector<10x16x128xf32> to vector<8x16x128xf32>
    %60 = vector.shape_cast %29 : vector<128xf32> to vector<1x1x128xf32>
    %61 = vector.broadcast %60 : vector<1x1x128xf32> to vector<8x16x128xf32>
    %62 = arith.mulf %59, %61 : vector<8x16x128xf32>
    %63 = arith.addf %58, %62 : vector<8x16x128xf32>
    %64 = vector.extract_strided_slice %54 {offsets = [0, 0, 0], sizes = [8, 16, 128], strides = [1, 1, 1]} : vector<10x16x128xf32> to vector<8x16x128xf32>
    %65 = vector.shape_cast %31 : vector<128xf32> to vector<1x1x128xf32>
    %66 = vector.broadcast %65 : vector<1x1x128xf32> to vector<8x16x128xf32>
    %67 = arith.mulf %64, %66 : vector<8x16x128xf32>
    %68 = arith.addf %63, %67 : vector<8x16x128xf32>
    %69 = vector.extract_strided_slice %48 {offsets = [1, 0, 0], sizes = [8, 16, 128], strides = [1, 1, 1]} : vector<10x16x128xf32> to vector<8x16x128xf32>
    %70 = vector.shape_cast %33 : vector<128xf32> to vector<1x1x128xf32>
    %71 = vector.broadcast %70 : vector<1x1x128xf32> to vector<8x16x128xf32>
    %72 = arith.mulf %69, %71 : vector<8x16x128xf32>
    %73 = arith.addf %68, %72 : vector<8x16x128xf32>
    %74 = vector.extract_strided_slice %51 {offsets = [1, 0, 0], sizes = [8, 16, 128], strides = [1, 1, 1]} : vector<10x16x128xf32> to vector<8x16x128xf32>
    %75 = vector.shape_cast %35 : vector<128xf32> to vector<1x1x128xf32>
    %76 = vector.broadcast %75 : vector<1x1x128xf32> to vector<8x16x128xf32>
    %77 = arith.mulf %74, %76 : vector<8x16x128xf32>
    %78 = arith.addf %73, %77 : vector<8x16x128xf32>
    %79 = vector.extract_strided_slice %54 {offsets = [1, 0, 0], sizes = [8, 16, 128], strides = [1, 1, 1]} : vector<10x16x128xf32> to vector<8x16x128xf32>
    %80 = vector.shape_cast %37 : vector<128xf32> to vector<1x1x128xf32>
    %81 = vector.broadcast %80 : vector<1x1x128xf32> to vector<8x16x128xf32>
    %82 = arith.mulf %79, %81 : vector<8x16x128xf32>
    %83 = arith.addf %78, %82 : vector<8x16x128xf32>
    %84 = vector.extract_strided_slice %48 {offsets = [2, 0, 0], sizes = [8, 16, 128], strides = [1, 1, 1]} : vector<10x16x128xf32> to vector<8x16x128xf32>
    %85 = vector.shape_cast %39 : vector<128xf32> to vector<1x1x128xf32>
    %86 = vector.broadcast %85 : vector<1x1x128xf32> to vector<8x16x128xf32>
    %87 = arith.mulf %84, %86 : vector<8x16x128xf32>
    %88 = arith.addf %83, %87 : vector<8x16x128xf32>
    %89 = vector.extract_strided_slice %51 {offsets = [2, 0, 0], sizes = [8, 16, 128], strides = [1, 1, 1]} : vector<10x16x128xf32> to vector<8x16x128xf32>
    %90 = vector.shape_cast %41 : vector<128xf32> to vector<1x1x128xf32>
    %91 = vector.broadcast %90 : vector<1x1x128xf32> to vector<8x16x128xf32>
    %92 = arith.mulf %89, %91 : vector<8x16x128xf32>
    %93 = arith.addf %88, %92 : vector<8x16x128xf32>
    %94 = vector.extract_strided_slice %54 {offsets = [2, 0, 0], sizes = [8, 16, 128], strides = [1, 1, 1]} : vector<10x16x128xf32> to vector<8x16x128xf32>
    %95 = vector.shape_cast %43 : vector<128xf32> to vector<1x1x128xf32>
    %96 = vector.broadcast %95 : vector<1x1x128xf32> to vector<8x16x128xf32>
    %97 = arith.mulf %94, %96 : vector<8x16x128xf32>
    %98 = arith.addf %93, %97 : vector<8x16x128xf32>
    %99 = vector.shape_cast %98 : vector<8x16x128xf32> to vector<128x128xf32>
    %cst = arith.constant dense<0.000000e+00> : vector<128x128xf32>
    %100 = tpu.matmul %99, %44, %cst {dimension_numbers = #tpu.dot_dimension_numbers<[1], [0], [0], [1], [0, 0, 1, 1], [], []>} : vector<128x128xf32>, vector<128x128xf32>, vector<128x128xf32> -> vector<128x128xf32>
    %101 = vector.broadcast %45 : vector<1x128xf32> to vector<128x128xf32>
    %102 = arith.addf %100, %101 : vector<128x128xf32>
    %103 = vector.shape_cast %102 : vector<128x128xf32> to vector<8x16x128xf32>
    %c0_26 = arith.constant 0 : index
    %c0_27 = arith.constant 0 : index
    %c0_28 = arith.constant 0 : index
    %c0_29 = arith.constant 0 : index
    %104 = vector.load %arg6[%c0_26, %c0_27, %c0_28, %c0_29] : memref<1x16x16x128xf32, #tpu.memory_space<vmem>>, vector<1x8x16x128xf32>
    %105 = vector.shape_cast %104 : vector<1x8x16x128xf32> to vector<8x16x128xf32>
    %106 = vector.shape_cast %103 : vector<8x16x128xf32> to vector<1x8x16x128xf32>
    tpu.vector_store %arg6[%c0_26, %c0_27, %c0_28, %c0_29], %106 {strides = array<i32>} : memref<1x16x16x128xf32, #tpu.memory_space<vmem>>, vector<1x8x16x128xf32>,
    %107 = arith.index_cast %9 : i32 to index
    %c8 = arith.constant 8 : index
    %c0_30 = arith.constant 0 : index
    %c0_31 = arith.constant 0 : index
    %108 = vector.load %arg7[%107, %c8, %c0_30, %c0_31] : memref<2x18x24x128xf32, #tpu.memory_space<vmem>>, vector<1x10x16x128xf32>
    %109 = vector.shape_cast %108 : vector<1x10x16x128xf32> to vector<10x16x128xf32>
    %110 = arith.index_cast %9 : i32 to index
    %c8_32 = arith.constant 8 : index
    %c1_33 = arith.constant 1 : index
    %c0_34 = arith.constant 0 : index
    %111 = vector.load %arg7[%110, %c8_32, %c1_33, %c0_34] : memref<2x18x24x128xf32, #tpu.memory_space<vmem>>, vector<1x10x16x128xf32>
    %112 = vector.shape_cast %111 : vector<1x10x16x128xf32> to vector<10x16x128xf32>
    %113 = arith.index_cast %9 : i32 to index
    %c8_35 = arith.constant 8 : index
    %c2_36 = arith.constant 2 : index
    %c0_37 = arith.constant 0 : index
    %114 = vector.load %arg7[%113, %c8_35, %c2_36, %c0_37] : memref<2x18x24x128xf32, #tpu.memory_space<vmem>>, vector<1x10x16x128xf32>
    %115 = vector.shape_cast %114 : vector<1x10x16x128xf32> to vector<10x16x128xf32>
    %116 = vector.extract_strided_slice %109 {offsets = [0, 0, 0], sizes = [8, 16, 128], strides = [1, 1, 1]} : vector<10x16x128xf32> to vector<8x16x128xf32>
    %117 = vector.shape_cast %27 : vector<128xf32> to vector<1x1x128xf32>
    %118 = vector.broadcast %117 : vector<1x1x128xf32> to vector<8x16x128xf32>
    %119 = arith.mulf %116, %118 : vector<8x16x128xf32>
    %120 = vector.extract_strided_slice %112 {offsets = [0, 0, 0], sizes = [8, 16, 128], strides = [1, 1, 1]} : vector<10x16x128xf32> to vector<8x16x128xf32>
    %121 = vector.shape_cast %29 : vector<128xf32> to vector<1x1x128xf32>
    %122 = vector.broadcast %121 : vector<1x1x128xf32> to vector<8x16x128xf32>
    %123 = arith.mulf %120, %122 : vector<8x16x128xf32>
    %124 = arith.addf %119, %123 : vector<8x16x128xf32>
    %125 = vector.extract_strided_slice %115 {offsets = [0, 0, 0], sizes = [8, 16, 128], strides = [1, 1, 1]} : vector<10x16x128xf32> to vector<8x16x128xf32>
    %126 = vector.shape_cast %31 : vector<128xf32> to vector<1x1x128xf32>
    %127 = vector.broadcast %126 : vector<1x1x128xf32> to vector<8x16x128xf32>
    %128 = arith.mulf %125, %127 : vector<8x16x128xf32>
    %129 = arith.addf %124, %128 : vector<8x16x128xf32>
    %130 = vector.extract_strided_slice %109 {offsets = [1, 0, 0], sizes = [8, 16, 128], strides = [1, 1, 1]} : vector<10x16x128xf32> to vector<8x16x128xf32>
    %131 = vector.shape_cast %33 : vector<128xf32> to vector<1x1x128xf32>
    %132 = vector.broadcast %131 : vector<1x1x128xf32> to vector<8x16x128xf32>
    %133 = arith.mulf %130, %132 : vector<8x16x128xf32>
    %134 = arith.addf %129, %133 : vector<8x16x128xf32>
    %135 = vector.extract_strided_slice %112 {offsets = [1, 0, 0], sizes = [8, 16, 128], strides = [1, 1, 1]} : vector<10x16x128xf32> to vector<8x16x128xf32>
    %136 = vector.shape_cast %35 : vector<128xf32> to vector<1x1x128xf32>
    %137 = vector.broadcast %136 : vector<1x1x128xf32> to vector<8x16x128xf32>
    %138 = arith.mulf %135, %137 : vector<8x16x128xf32>
    %139 = arith.addf %134, %138 : vector<8x16x128xf32>
    %140 = vector.extract_strided_slice %115 {offsets = [1, 0, 0], sizes = [8, 16, 128], strides = [1, 1, 1]} : vector<10x16x128xf32> to vector<8x16x128xf32>
    %141 = vector.shape_cast %37 : vector<128xf32> to vector<1x1x128xf32>
    %142 = vector.broadcast %141 : vector<1x1x128xf32> to vector<8x16x128xf32>
    %143 = arith.mulf %140, %142 : vector<8x16x128xf32>
    %144 = arith.addf %139, %143 : vector<8x16x128xf32>
    %145 = vector.extract_strided_slice %109 {offsets = [2, 0, 0], sizes = [8, 16, 128], strides = [1, 1, 1]} : vector<10x16x128xf32> to vector<8x16x128xf32>
    %146 = vector.shape_cast %39 : vector<128xf32> to vector<1x1x128xf32>
    %147 = vector.broadcast %146 : vector<1x1x128xf32> to vector<8x16x128xf32>
    %148 = arith.mulf %145, %147 : vector<8x16x128xf32>
    %149 = arith.addf %144, %148 : vector<8x16x128xf32>
    %150 = vector.extract_strided_slice %112 {offsets = [2, 0, 0], sizes = [8, 16, 128], strides = [1, 1, 1]} : vector<10x16x128xf32> to vector<8x16x128xf32>
    %151 = vector.shape_cast %41 : vector<128xf32> to vector<1x1x128xf32>
    %152 = vector.broadcast %151 : vector<1x1x128xf32> to vector<8x16x128xf32>
    %153 = arith.mulf %150, %152 : vector<8x16x128xf32>
    %154 = arith.addf %149, %153 : vector<8x16x128xf32>
    %155 = vector.extract_strided_slice %115 {offsets = [2, 0, 0], sizes = [8, 16, 128], strides = [1, 1, 1]} : vector<10x16x128xf32> to vector<8x16x128xf32>
    %156 = vector.shape_cast %43 : vector<128xf32> to vector<1x1x128xf32>
    %157 = vector.broadcast %156 : vector<1x1x128xf32> to vector<8x16x128xf32>
    %158 = arith.mulf %155, %157 : vector<8x16x128xf32>
    %159 = arith.addf %154, %158 : vector<8x16x128xf32>
    %160 = vector.shape_cast %159 : vector<8x16x128xf32> to vector<128x128xf32>
    %cst_38 = arith.constant dense<0.000000e+00> : vector<128x128xf32>
    %161 = tpu.matmul %160, %44, %cst_38 {dimension_numbers = #tpu.dot_dimension_numbers<[1], [0], [0], [1], [0, 0, 1, 1], [], []>} : vector<128x128xf32>, vector<128x128xf32>, vector<128x128xf32> -> vector<128x128xf32>
    %162 = vector.broadcast %45 : vector<1x128xf32> to vector<128x128xf32>
    %163 = arith.addf %161, %162 : vector<128x128xf32>
    %164 = vector.shape_cast %163 : vector<128x128xf32> to vector<8x16x128xf32>
    %c0_39 = arith.constant 0 : index
    %c8_40 = arith.constant 8 : index
    %c0_41 = arith.constant 0 : index
    %c0_42 = arith.constant 0 : index
    %165 = vector.load %arg6[%c0_39, %c8_40, %c0_41, %c0_42] : memref<1x16x16x128xf32, #tpu.memory_space<vmem>>, vector<1x8x16x128xf32>
    %166 = vector.shape_cast %165 : vector<1x8x16x128xf32> to vector<8x16x128xf32>
    %167 = vector.shape_cast %164 : vector<8x16x128xf32> to vector<1x8x16x128xf32>
    tpu.vector_store %arg6[%c0_39, %c8_40, %c0_41, %c0_42], %167 {strides = array<i32>} : memref<1x16x16x128xf32, #tpu.memory_space<vmem>>, vector<1x8x16x128xf32>,
    return
  }
  func.func @transform_1(%arg0: i32, %arg1: i32) -> (i32, i32, i32) {
    %c0_i32 = arith.constant 0 : i32
    %c0_i32_0 = arith.constant 0 : i32
    %c0_i32_1 = arith.constant 0 : i32
    %c0_i32_2 = arith.constant 0 : i32
    return %c0_i32, %c0_i32_0, %c0_i32_1 : i32, i32, i32
  }
  func.func @transform_2(%arg0: i32, %arg1: i32) -> (i32, i32) {
    %c0_i32 = arith.constant 0 : i32
    %c0_i32_0 = arith.constant 0 : i32
    %c0_i32_1 = arith.constant 0 : i32
    return %c0_i32, %c0_i32_0 : i32, i32
  }
  func.func @transform_3(%arg0: i32, %arg1: i32) -> (i32, i32) {
    %c0_i32 = arith.constant 0 : i32
    %c0_i32_0 = arith.constant 0 : i32
    %c0_i32_1 = arith.constant 0 : i32
    return %c0_i32, %c0_i32_0 : i32, i32
  }
  func.func @transform_4(%arg0: i32, %arg1: i32) -> (i32, i32, i32, i32) {
    %c0_i32 = arith.constant 0 : i32
    %c0_i32_0 = arith.constant 0 : i32
    %c0_i32_1 = arith.constant 0 : i32
    return %arg0, %arg1, %c0_i32, %c0_i32_0 : i32, i32, i32, i32
  }
}

</mosaic_0001>

<llo_original>
// kernel: tpu_custom_call.1
$region0: #{tpu_custom_call.1}
  #allocation0 [shape = 'u32[]', space=smem, size = 0x4, offset = 0x4, fixed_abs, tag = 'smem constant byte address 0x4 - core index']
  #allocation1 [shape = 'u32[144,128]{1,0:T(1,128)}', space=vmem, size = 0x12000, scoped, tag = 'internal scratch']
  #allocation2 [shape = 'f32[2,18,24,128]{3,2,1,0:T(8,128)}', space=vmem, size = 0x6c000, scoped, tag = 'scratch operand']
  #allocation3 [shape = 's32[2]{0}', space=sflag, size = 0x8, scoped, tag = 'scratch operand']
  #allocation10 [shape = 's32[]', space=sflag, size = 0x4, offset = 0, fixed_abs, tag = 'sflag constant byte address 0x0 - dummy sync flag']
  #allocation11 [shape = 's32[]', space=sflag, size = 0x4, offset = 0, fixed_abs, tag = 'sflag constant byte address 0x0 - dummy sync flag']
  #allocation12 [shape = 'u32[]', space=smem, size = 0x4, offset = 0x44, fixed_abs, tag = 'smem constant byte address 0x44 - assertion arg 0']
  #allocation13 [shape = 'u32[]', space=smem, size = 0x4, offset = 0x48, fixed_abs, tag = 'smem constant byte address 0x48 - assertion arg 1']
  #allocation14 [shape = 's32[]', space=sflag, size = 0x4, offset = 0, fixed_abs, tag = 'sflag constant byte address 0x0 - dummy sync flag']
  #allocation15 [shape = 's32[]', space=sflag, size = 0x4, offset = 0, fixed_abs, tag = 'sflag constant byte address 0x0 - dummy sync flag']
  %s0 = inlined_call_operand.hbm [shape: f32[2,18,24,128], index: 0, kind: input, shape index: {}]
  %s1 = inlined_call_operand.hbm [shape: f32[3,3,128], index: 1, kind: input, shape index: {}]
  %s2 = inlined_call_operand.hbm [shape: f32[128,128], index: 2, kind: input, shape index: {}]
  %s3 = inlined_call_operand.vmem [shape: f32[1,128], index: 3, kind: input, shape index: {}]
  %s4 = inlined_call_operand.hbm [shape: f32[2,16,16,128], index: 4, kind: output, shape index: {}]
  %s5 = sld [smem:[#allocation0]]
  $region69: #{tpu_custom_call.1} parent=0
    _
  %s7 = ssub.s32 1, %s5
  %s8 = scalar_select 0, %s7, %s5
  $region1: #{tpu_custom_call.1} parent=0
    #allocation4 [shape = 'u8[6144]{0}', space=vmem, size = 0x1800, scoped, tag = 'input window, operand 1, single buffered']
    #allocation5 [shape = 's32[2]{0}', space=sflag, size = 0x8, scoped, tag = 'scoped memory for tpu_custom_call.1']
    #allocation6 [shape = 's32[2]{0}', space=sflag, size = 0x8, scoped, tag = 'scoped memory for tpu_custom_call.1']
    #allocation7 [shape = 'u8[65536]{0}', space=vmem, size = 0x10000, scoped, tag = 'input window, operand 2, single buffered']
    #allocation8 [shape = 's32[1]{0}', space=sflag, size = 0x4, scoped, tag = 'scoped memory for tpu_custom_call.1']
    #allocation9 [shape = 'u8[262144]{0}', space=vmem, size = 0x40000, scoped, tag = 'output window, operand 0']
    %9 = vsyncpa [#allocation5], 0
    %10 = vsyncpa [#allocation8], 0
    %11 = vsyncpa [#allocation6], 0
    %s12 = scalar_lea.sflag [#allocation6], 1
    %13 = vsyncpa %s12, 0
    loop: start=0, step=1, limit=4
    $region2: #{tpu_custom_call.1} parent=1 // loop_pre_header
      _
    $region3: #{tpu_custom_call.1} parent=1 // loop_header
      %s15 = sphi 0, %s19
      %p16 = scmp.ge.s32.totalorder %s15, 4
      %s22 = sphi 0, %s34
      %s23 = sphi 0, %s30
      %s24 = sphi 0, %s22
      %s25 = sphi 0, %s23
      %s26 = sphi 0, %s24
      %s27 = sphi 0, %s25
      %s35 = sphi 0, %s35
      %s37 = sphi 0, %s35
      %s38 = sphi 0, %s37
      %s52 = sphi 0, %s38
      %s56 = sphi 0, %s56
      %s58 = sphi 0, %s56
      %s59 = sphi 0, %s58
      %s73 = sphi 0, %s59
      %s77 = sphi 0, %s77
      %s79 = sphi 0, %s77
      %s80 = sphi 0, %s79
      %s94 = sphi 0, %s80
      %s102 = sphi 0, %s104
      %s105 = sphi 0, %s102
      %s106 = sphi 0, %s105
      %s122 = sphi 0, %s106
    $region4: #{tpu_custom_call.1} parent=1 // loop_header_branch
      %18 = sbr.rel (%p16) target = $region8
    $region5: #{tpu_custom_call.1} parent=1 // loop_body
      %s20 = ssub.s32 %s15, 1
      %s21 = ssub.s32 %s15, 2
      %s28 = sadd.s32 1, %s23
      %p29 = scmp.ge.s32.totalorder %s28, 1
      %s30 = scalar_select %p29, 0, %s28
      %s31 = sadd.s32 1, %s22
      %s32 = scalar_select %p29, %s31, %s22
      %p33 = scmp.ge.s32.totalorder %s32, 2
      %s34 = scalar_select %p33, 0, %s32
      %s36 = sadd.s32 %s35, 1
      %p39 = scmp.eq.s32.totalorder %s15, 1
      %p40 = scmp.ne.s32.totalorder %s35, %s37
      %p41 = scmp.eq.s32.totalorder %s15, 0
      %p42 = por %p40, %p41
      %p43 = scmp.ne.s32.totalorder %s35, %s37
      %p44 = scmp.eq.s32.totalorder %s20, 1
      %p45 = por %p43, %p44
      %p46 = scmp.ne.s32.totalorder %s37, %s38
      %p47 = scmp.eq.s32.totalorder %s20, 0
      %p48 = por %p46, %p47
      %p49 = scmp.ne.s32.totalorder %s37, %s38
      %p50 = scmp.eq.s32.totalorder %s21, 1
      %p51 = por %p49, %p50
      %p53 = scmp.ne.s32.totalorder %s38, %s52
      %p54 = scmp.eq.s32.totalorder %s21, 0
      %p55 = por %p53, %p54
      %s57 = sadd.s32 %s56, 1
      %p60 = scmp.eq.s32.totalorder %s15, 1
      %p61 = scmp.ne.s32.totalorder %s56, %s58
      %p62 = scmp.eq.s32.totalorder %s15, 0
      %p63 = por %p61, %p62
      %p64 = scmp.ne.s32.totalorder %s56, %s58
      %p65 = scmp.eq.s32.totalorder %s20, 1
      %p66 = por %p64, %p65
      %p67 = scmp.ne.s32.totalorder %s58, %s59
      %p68 = scmp.eq.s32.totalorder %s20, 0
      %p69 = por %p67, %p68
      %p70 = scmp.ne.s32.totalorder %s58, %s59
      %p71 = scmp.eq.s32.totalorder %s21, 1
      %p72 = por %p70, %p71
      %p74 = scmp.ne.s32.totalorder %s59, %s73
      %p75 = scmp.eq.s32.totalorder %s21, 0
      %p76 = por %p74, %p75
      %s78 = sadd.s32 %s77, 1
      %p81 = scmp.eq.s32.totalorder %s15, 1
      %p82 = scmp.ne.s32.totalorder %s77, %s79
      %p83 = scmp.eq.s32.totalorder %s15, 0
      %p84 = por %p82, %p83
      %p85 = scmp.ne.s32.totalorder %s77, %s79
      %p86 = scmp.eq.s32.totalorder %s20, 1
      %p87 = por %p85, %p86
      %p88 = scmp.ne.s32.totalorder %s79, %s80
      %p89 = scmp.eq.s32.totalorder %s20, 0
      %p90 = por %p88, %p89
      %p91 = scmp.ne.s32.totalorder %s79, %s80
      %p92 = scmp.eq.s32.totalorder %s21, 1
      %p93 = por %p91, %p92
      %p95 = scmp.ne.s32.totalorder %s80, %s94
      %p96 = scmp.eq.s32.totalorder %s21, 0
      %p97 = por %p95, %p96
      %s98 = ssub.s32 %s22, %s34
      %s99 = ssub.s32 %s23, %s30
      %s100 = sor.u32 %s98, %s99
      %p101 = scmp.eq.s32.totalorder %s100, 0
      %s103 = sadd.s32 %s102, 1
      %s104 = scalar_select %p101, %s102, %s103
      %p107 = pneg %p101
      %p108 = scmp.eq.s32.totalorder %s15, 1
      %p109 = por %p107, %p108
      %p110 = scmp.ne.s32.totalorder %s102, %s105
      %p111 = scmp.eq.s32.totalorder %s15, 0
      %p112 = por %p110, %p111
      %p113 = scmp.ne.s32.totalorder %s102, %s105
      %p114 = scmp.eq.s32.totalorder %s20, 1
      %p115 = por %p113, %p114
      %p116 = scmp.ne.s32.totalorder %s105, %s106
      %p117 = scmp.eq.s32.totalorder %s20, 0
      %p118 = por %p116, %p117
      %p119 = scmp.ne.s32.totalorder %s105, %s106
      %p120 = scmp.eq.s32.totalorder %s21, 1
      %p121 = por %p119, %p120
      %p123 = scmp.ne.s32.totalorder %s106, %s122
      %p124 = scmp.eq.s32.totalorder %s21, 0
      %p125 = por %p123, %p124
      %p126 = scmp.le.s32.totalorder 1, %s15
      %p127 = scmp.lt.s32.totalorder %s15, 3
      %p128 = pnand %p126, %p127
      %p129 = pneg %p128
      // Predicated region
      $region9: #{tpu_custom_call.1} parent=5 // pred_check
        _
      $region10: #{tpu_custom_call.1} parent=5 // pred_check_branch
        %131 = sbr.rel (%p128) target = $region12
      $region11: #{tpu_custom_call.1} parent=5 // pred_region
        %s132 = ssub.s32 %s15, 1
        // Predicated region
        $region13: #{tpu_custom_call.1} parent=11 // pred_check
          %p133 = pneg %p48
        $region14: #{tpu_custom_call.1} parent=11 // pred_check_branch
          %135 = sbr.rel (%p133) target = $region16
        $region15: #{tpu_custom_call.1} parent=11 // pred_region
          %s137 = ssub.s32 192, 192
          %138 = vsyncadd [#allocation5], %s137
          %s139 = sshll.u32 [#allocation4], 4
          %s140 = int_to_ptr.vmem [resolvable:$true] %s139
          %145 = dma.hbm_to_vmem [thread:$0]  %s1, 192, %s140, [#allocation5], 64, 64, 4
        $region16: #{tpu_custom_call.1} parent=11 // pred_fallthru
          _
        // Predicated region
        $region17: #{tpu_custom_call.1} parent=11 // pred_check
          %p146 = pneg %p69
        $region18: #{tpu_custom_call.1} parent=11 // pred_check_branch
          %148 = sbr.rel (%p146) target = $region20
        $region19: #{tpu_custom_call.1} parent=11 // pred_region
          %s150 = ssub.s32 2048, 2048
          %151 = vsyncadd [#allocation8], %s150
          %s152 = sshll.u32 [#allocation7], 4
          %s153 = int_to_ptr.vmem [resolvable:$true] %s152
          %158 = dma.hbm_to_vmem [thread:$0]  %s2, 2048, %s153, [#allocation8], 128, 128, 8
        $region20: #{tpu_custom_call.1} parent=11 // pred_fallthru
          _
        // Predicated region
        $region21: #{tpu_custom_call.1} parent=11 // pred_check
          %p159 = pneg %p90
        $region22: #{tpu_custom_call.1} parent=11 // pred_check_branch
          %161 = sbr.rel (%p159) target = $region24
        $region23: #{tpu_custom_call.1} parent=11 // pred_region
          _
        $region24: #{tpu_custom_call.1} parent=11 // pred_fallthru
          _
      $region12: #{tpu_custom_call.1} parent=5 // pred_fallthru
        _
      %p162 = scmp.lt.s32.totalorder %s15, 2
      // Predicated region
      $region25: #{tpu_custom_call.1} parent=5 // pred_check
        %p163 = pneg %p162
      $region26: #{tpu_custom_call.1} parent=5 // pred_check_branch
        %165 = sbr.rel (%p163) target = $region28
      $region27: #{tpu_custom_call.1} parent=5 // pred_region
        _
      $region28: #{tpu_custom_call.1} parent=5 // pred_fallthru
        _
      %p166 = scmp.le.s32.totalorder 1, %s15
      %p167 = scmp.lt.s32.totalorder %s15, 3
      %p168 = pnand %p166, %p167
      %p169 = pneg %p168
      // Predicated region
      $region29: #{tpu_custom_call.1} parent=5 // pred_check
        _
      $region30: #{tpu_custom_call.1} parent=5 // pred_check_branch
        %171 = sbr.rel (%p168) target = $region32
      $region31: #{tpu_custom_call.1} parent=5 // pred_region
        %s172 = ssub.s32 %s15, 1
        // Predicated region
        $region33: #{tpu_custom_call.1} parent=31 // pred_check
          %p173 = pneg %p48
        $region34: #{tpu_custom_call.1} parent=31 // pred_check_branch
          %175 = sbr.rel (%p173) target = $region36
        $region35: #{tpu_custom_call.1} parent=31 // pred_region
          %176 = dma.done [#allocation5], 192
        $region36: #{tpu_custom_call.1} parent=31 // pred_fallthru
          _
        // Predicated region
        $region37: #{tpu_custom_call.1} parent=31 // pred_check
          %p177 = pneg %p69
        $region38: #{tpu_custom_call.1} parent=31 // pred_check_branch
          %179 = sbr.rel (%p177) target = $region40
        $region39: #{tpu_custom_call.1} parent=31 // pred_region
          %180 = dma.done [#allocation8], 2048
        $region40: #{tpu_custom_call.1} parent=31 // pred_fallthru
          _
        %p181 = pneg %p48
        %p182 = pneg %p45
        %p183 = pneg %p69
        %p184 = pneg %p66
        %p185 = pneg %p90
        %p186 = pneg %p87
        %p187 = pneg %p118
        %p188 = pneg %p115
        %s189 = sand.u32 %s105, 1
        %s190 = scalar_lea.sflag [#allocation6], %s189
        %s191 = sand.u32 %s105, 1
        %s192 = smul.addr %s191, 256
        %s193 = scalar_lea.vmem [#allocation9], %s192
        %s194 = smul.u32 16, %s25
        %p195 = scmp.lt.s32.totalorder %s25, 0
        %s196 = ssub.s32 0, %s25
        %s197 = scalar_select %p195, %s196, %s25
        %s198 = sand.u32 %s197, 1
        %s199 = ssub.s32 0, %s198
        %s200 = scalar_select %p195, %s199, %s198
        %p201 = scmp.ne.s32.totalorder %s200, 0
        %p202 = scmp.lt.s32.totalorder %s200, 0
        %p203 = pnand %p202, %p201
        %p204 = pneg %p203
        %s205 = sadd.s32 %s200, 2
        %s206 = scalar_select %p204, %s205, %s200
        %p207 = scmp.eq.s32.totalorder %s25, 0
        // Predicated region
        $region41: #{tpu_custom_call.1} parent=31 // pred_check
          %p208 = pneg %p207
        $region42: #{tpu_custom_call.1} parent=31 // pred_check_branch
          %210 = sbr.rel (%p208) target = $region44
        $region43: #{tpu_custom_call.1} parent=31 // pred_region
          %s211 = smul.u32 0, 24
          %s212 = smul.u32 %s24, 432
          %s213 = sadd.s32 %s211, %s212
          %s214 = smul.addr %s213, 16
          %s215 = scalar_lea.hbm %s0, %s214
          // Predicated region
          $region45: #{tpu_custom_call.1} parent=43 // pred_check
            _
          $region46: #{tpu_custom_call.1} parent=43 // pred_check_branch
            %217 = sbr.rel target = $region48
          $region47: #{tpu_custom_call.1} parent=43 // pred_region
            %218 = sst [smem:[#allocation12]] [#allocation11]
            %219 = sst [smem:[#allocation13]] [#allocation10]
          $region48: #{tpu_custom_call.1} parent=43 // pred_fallthru
            _
          %221 = shalt.err (0)
          %s223 = sshll.u32 [#allocation2], 4
          %s224 = int_to_ptr.vmem [resolvable:$true] %s223
          %226 = dma.hbm_to_vmem [thread:$0]  %s215, 6912, %s224, [#allocation3]
        $region44: #{tpu_custom_call.1} parent=31 // pred_fallthru
          _
        %s227 = smul.u32 %s25, 16
        %s228 = scalar_lea.sflag [#allocation3], %s206
        %s229 = smul.u32 18, 24
        %s230 = smul.u32 %s229, 1
        %s231 = sshll.u32 %s230, 4
        %232 = dma.done %s228, %s231
        %s233 = sadd.s32 %s25, 1
        %p234 = scmp.lt.s32.totalorder %s233, 1
        // Predicated region
        $region49: #{tpu_custom_call.1} parent=31 // pred_check
          %p235 = pneg %p234
        $region50: #{tpu_custom_call.1} parent=31 // pred_check_branch
          %237 = sbr.rel (%p235) target = $region52
        $region51: #{tpu_custom_call.1} parent=31 // pred_region
          %s238 = ssub.s32 1, %s206
          %s239 = smul.u32 %s233, 16
          %s240 = smul.u32 %s239, 24
          %s241 = smul.u32 %s24, 432
          %s242 = sadd.s32 %s240, %s241
          %s243 = smul.addr %s242, 16
          %s244 = scalar_lea.hbm %s0, %s243
          %s245 = smul.u32 %s238, 432
          %s246 = scalar_lea.vmem [#allocation2], %s245
          %s247 = scalar_lea.sflag [#allocation3], %s238
          // Predicated region
          $region53: #{tpu_custom_call.1} parent=51 // pred_check
            _
          $region54: #{tpu_custom_call.1} parent=51 // pred_check_branch
            %249 = sbr.rel target = $region56
          $region55: #{tpu_custom_call.1} parent=51 // pred_region
            %250 = sst [smem:[#allocation12]] [#allocation15]
            %251 = sst [smem:[#allocation13]] [#allocation14]
          $region56: #{tpu_custom_call.1} parent=51 // pred_fallthru
            _
          %253 = shalt.err (0)
          %s255 = sshll.u32 %s246, 4
          %s256 = int_to_ptr.vmem [resolvable:$true] %s255
          %258 = dma.hbm_to_vmem [thread:$0]  %s244, 6912, %s256, %s247
        $region52: #{tpu_custom_call.1} parent=31 // pred_fallthru
          _
        %v259 = vld [vmem:[#allocation4] sm:$0x7]
        %v260 = vld [vmem:[#allocation4 + $0x4] sm:$0x7]
        %v261 = vld [vmem:[#allocation4 + $0x8] sm:$0x7]
        %v262 = vld [vmem:[#allocation7] sm:$0xff]
        %v263 = vld [vmem:[#allocation7 + $0x8] sm:$0xff]
        %v264 = vld [vmem:[#allocation7 + $0x10] sm:$0xff]
        %v265 = vld [vmem:[#allocation7 + $0x18] sm:$0xff]
        %v266 = vld [vmem:[#allocation7 + $0x20] sm:$0xff]
        %v267 = vld [vmem:[#allocation7 + $0x28] sm:$0xff]
        %v268 = vld [vmem:[#allocation7 + $0x30] sm:$0xff]
        %v269 = vld [vmem:[#allocation7 + $0x38] sm:$0xff]
        %v270 = vld [vmem:[#allocation7 + $0x40] sm:$0xff]
        %v271 = vld [vmem:[#allocation7 + $0x48] sm:$0xff]
        %v272 = vld [vmem:[#allocation7 + $0x50] sm:$0xff]
        %v273 = vld [vmem:[#allocation7 + $0x58] sm:$0xff]
        %v274 = vld [vmem:[#allocation7 + $0x60] sm:$0xff]
        %v275 = vld [vmem:[#allocation7 + $0x68] sm:$0xff]
        %v276 = vld [vmem:[#allocation7 + $0x70] sm:$0xff]
        %v277 = vld [vmem:[#allocation7 + $0x78] sm:$0xff]
        %v278 = vld [vmem:[%s3] sm:$0x1]
        %s279 = smul.u32 %s206, 432
        %s280 = scalar_lea.vmem [#allocation2], %s279
        %v281 = vld [vmem:[%s280] sm:$0xff]
        %v282 = vld [vmem:[%s280 + $0x8] sm:$0xff]
        %v283 = vld [vmem:[%s280 + $0x18] sm:$0xff]
        %v284 = vld [vmem:[%s280 + $0x20] sm:$0xff]
        %v285 = vld [vmem:[%s280 + $0x30] sm:$0xff]
        %v286 = vld [vmem:[%s280 + $0x38] sm:$0xff]
        %v287 = vld [vmem:[%s280 + $0x48] sm:$0xff]
        %v288 = vld [vmem:[%s280 + $0x50] sm:$0xff]
        %v289 = vld [vmem:[%s280 + $0x60] sm:$0xff]
        %v290 = vld [vmem:[%s280 + $0x68] sm:$0xff]
        %v291 = vld [vmem:[%s280 + $0x78] sm:$0xff]
        %v292 = vld [vmem:[%s280 + $0x80] sm:$0xff]
        %v293 = vld [vmem:[%s280 + $0x90] sm:$0xff]
        %v294 = vld [vmem:[%s280 + $0x98] sm:$0xff]
        %v295 = vld [vmem:[%s280 + $0xa8] sm:$0xff]
        %v296 = vld [vmem:[%s280 + $0xb0] sm:$0xff]
        %v297 = vld [vmem:[%s280 + $0xc0] sm:$0xff]
        %v298 = vld [vmem:[%s280 + $0xc8] sm:$0xff]
        %v299 = vld [vmem:[%s280 + $0xd8] sm:$0xff]
        %v300 = vld [vmem:[%s280 + $0xe0] sm:$0xff]
        %v301 = vld [vmem:[%s280 + $0x1] sm:$0xff]
        %v302 = vld [vmem:[%s280 + $0x9] sm:$0xff]
        %v303 = vld [vmem:[%s280 + $0x19] sm:$0xff]
        %v304 = vld [vmem:[%s280 + $0x21] sm:$0xff]
        %v305 = vld [vmem:[%s280 + $0x31] sm:$0xff]
        %v306 = vld [vmem:[%s280 + $0x39] sm:$0xff]
        %v307 = vld [vmem:[%s280 + $0x49] sm:$0xff]
        %v308 = vld [vmem:[%s280 + $0x51] sm:$0xff]
        %v309 = vld [vmem:[%s280 + $0x61] sm:$0xff]
        %v310 = vld [vmem:[%s280 + $0x69] sm:$0xff]
        %v311 = vld [vmem:[%s280 + $0x79] sm:$0xff]
        %v312 = vld [vmem:[%s280 + $0x81] sm:$0xff]
        %v313 = vld [vmem:[%s280 + $0x91] sm:$0xff]
        %v314 = vld [vmem:[%s280 + $0x99] sm:$0xff]
        %v315 = vld [vmem:[%s280 + $0xa9] sm:$0xff]
        %v316 = vld [vmem:[%s280 + $0xb1] sm:$0xff]
        %v317 = vld [vmem:[%s280 + $0xc1] sm:$0xff]
        %v318 = vld [vmem:[%s280 + $0xc9] sm:$0xff]
        %v319 = vld [vmem:[%s280 + $0xd9] sm:$0xff]
        %v320 = vld [vmem:[%s280 + $0xe1] sm:$0xff]
        %v321 = vld [vmem:[%s280 + $0x2] sm:$0xff]
        %v322 = vld [vmem:[%s280 + $0xa] sm:$0xff]
        %v323 = vld [vmem:[%s280 + $0x1a] sm:$0xff]
        %v324 = vld [vmem:[%s280 + $0x22] sm:$0xff]
        %v325 = vld [vmem:[%s280 + $0x32] sm:$0xff]
        %v326 = vld [vmem:[%s280 + $0x3a] sm:$0xff]
        %v327 = vld [vmem:[%s280 + $0x4a] sm:$0xff]
        %v328 = vld [vmem:[%s280 + $0x52] sm:$0xff]
        %v329 = vld [vmem:[%s280 + $0x62] sm:$0xff]
        %v330 = vld [vmem:[%s280 + $0x6a] sm:$0xff]
        %v331 = vld [vmem:[%s280 + $0x7a] sm:$0xff]
        %v332 = vld [vmem:[%s280 + $0x82] sm:$0xff]
        %v333 = vld [vmem:[%s280 + $0x92] sm:$0xff]
        %v334 = vld [vmem:[%s280 + $0x9a] sm:$0xff]
        %v335 = vld [vmem:[%s280 + $0xaa] sm:$0xff]
        %v336 = vld [vmem:[%s280 + $0xb2] sm:$0xff]
        %v337 = vld [vmem:[%s280 + $0xc2] sm:$0xff]
        %v338 = vld [vmem:[%s280 + $0xca] sm:$0xff]
        %v339 = vld [vmem:[%s280 + $0xda] sm:$0xff]
        %v340 = vld [vmem:[%s280 + $0xe2] sm:$0xff]
        %v341 = vlaneseq
        %v342 = vshrl.u32 %v341, 7
        %v343 = vsub.s32 0, %v342
        %v344 = vrot.slane %v259, %v343
        %v345 = vmul.f32 %v281, %v344
        %v346 = vmul.f32 %v282, %v344
        %v347 = vmul.f32 %v283, %v344
        %v348 = vmul.f32 %v284, %v344
        %v349 = vmul.f32 %v285, %v344
        %v350 = vmul.f32 %v286, %v344
        %v351 = vmul.f32 %v287, %v344
        %v352 = vmul.f32 %v288, %v344
        %v353 = vmul.f32 %v289, %v344
        %v354 = vmul.f32 %v290, %v344
        %v355 = vmul.f32 %v291, %v344
        %v356 = vmul.f32 %v292, %v344
        %v357 = vmul.f32 %v293, %v344
        %v358 = vmul.f32 %v294, %v344
        %v359 = vmul.f32 %v295, %v344
        %v360 = vmul.f32 %v296, %v344
        %v361 = vlaneseq
        %v362 = vshrl.u32 %v361, 7
        %v363 = vsub.s32 1, %v362
        %v364 = vrot.slane %v259, %v363
        %v365 = vmul.f32 %v301, %v364
        %v366 = vmul.f32 %v302, %v364
        %v367 = vmul.f32 %v303, %v364
        %v368 = vmul.f32 %v304, %v364
        %v369 = vmul.f32 %v305, %v364
        %v370 = vmul.f32 %v306, %v364
        %v371 = vmul.f32 %v307, %v364
        %v372 = vmul.f32 %v308, %v364
        %v373 = vmul.f32 %v309, %v364
        %v374 = vmul.f32 %v310, %v364
        %v375 = vmul.f32 %v311, %v364
        %v376 = vmul.f32 %v312, %v364
        %v377 = vmul.f32 %v313, %v364
        %v378 = vmul.f32 %v314, %v364
        %v379 = vmul.f32 %v315, %v364
        %v380 = vmul.f32 %v316, %v364
        %v381 = vadd.f32 %v345, %v365
        %v382 = vadd.f32 %v346, %v366
        %v383 = vadd.f32 %v347, %v367
        %v384 = vadd.f32 %v348, %v368
        %v385 = vadd.f32 %v349, %v369
        %v386 = vadd.f32 %v350, %v370
        %v387 = vadd.f32 %v351, %v371
        %v388 = vadd.f32 %v352, %v372
        %v389 = vadd.f32 %v353, %v373
        %v390 = vadd.f32 %v354, %v374
        %v391 = vadd.f32 %v355, %v375
        %v392 = vadd.f32 %v356, %v376
        %v393 = vadd.f32 %v357, %v377
        %v394 = vadd.f32 %v358, %v378
        %v395 = vadd.f32 %v359, %v379
        %v396 = vadd.f32 %v360, %v380
        %v397 = vlaneseq
        %v398 = vshrl.u32 %v397, 7
        %v399 = vsub.s32 2, %v398
        %v400 = vrot.slane %v259, %v399
        %v401 = vmul.f32 %v321, %v400
        %v402 = vmul.f32 %v322, %v400
        %v403 = vmul.f32 %v323, %v400
        %v404 = vmul.f32 %v324, %v400
        %v405 = vmul.f32 %v325, %v400
        %v406 = vmul.f32 %v326, %v400
        %v407 = vmul.f32 %v327, %v400
        %v408 = vmul.f32 %v328, %v400
        %v409 = vmul.f32 %v329, %v400
        %v410 = vmul.f32 %v330, %v400
        %v411 = vmul.f32 %v331, %v400
        %v412 = vmul.f32 %v332, %v400
        %v413 = vmul.f32 %v333, %v400
        %v414 = vmul.f32 %v334, %v400
        %v415 = vmul.f32 %v335, %v400
        %v416 = vmul.f32 %v336, %v400
        %v417 = vadd.f32 %v381, %v401
        %v418 = vadd.f32 %v382, %v402
        %v419 = vadd.f32 %v383, %v403
        %v420 = vadd.f32 %v384, %v404
        %v421 = vadd.f32 %v385, %v405
        %v422 = vadd.f32 %v386, %v406
        %v423 = vadd.f32 %v387, %v407
        %v424 = vadd.f32 %v388, %v408
        %v425 = vadd.f32 %v389, %v409
        %v426 = vadd.f32 %v390, %v410
        %v427 = vadd.f32 %v391, %v411
        %v428 = vadd.f32 %v392, %v412
        %v429 = vadd.f32 %v393, %v413
        %v430 = vadd.f32 %v394, %v414
        %v431 = vadd.f32 %v395, %v415
        %v432 = vadd.f32 %v396, %v416
        %v433 = vlaneseq
        %v434 = vshrl.u32 %v433, 7
        %v435 = vsub.s32 0, %v434
        %v436 = vrot.slane %v260, %v435
        %v437 = vmul.f32 %v283, %v436
        %v438 = vmul.f32 %v284, %v436
        %v439 = vmul.f32 %v285, %v436
        %v440 = vmul.f32 %v286, %v436
        %v441 = vmul.f32 %v287, %v436
        %v442 = vmul.f32 %v288, %v436
        %v443 = vmul.f32 %v289, %v436
        %v444 = vmul.f32 %v290, %v436
        %v445 = vmul.f32 %v291, %v436
        %v446 = vmul.f32 %v292, %v436
        %v447 = vmul.f32 %v293, %v436
        %v448 = vmul.f32 %v294, %v436
        %v449 = vmul.f32 %v295, %v436
        %v450 = vmul.f32 %v296, %v436
        %v451 = vmul.f32 %v297, %v436
        %v452 = vmul.f32 %v298, %v436
        %v453 = vadd.f32 %v417, %v437
        %v454 = vadd.f32 %v418, %v438
        %v455 = vadd.f32 %v419, %v439
        %v456 = vadd.f32 %v420, %v440
        %v457 = vadd.f32 %v421, %v441
        %v458 = vadd.f32 %v422, %v442
        %v459 = vadd.f32 %v423, %v443
        %v460 = vadd.f32 %v424, %v444
        %v461 = vadd.f32 %v425, %v445
        %v462 = vadd.f32 %v426, %v446
        %v463 = vadd.f32 %v427, %v447
        %v464 = vadd.f32 %v428, %v448
        %v465 = vadd.f32 %v429, %v449
        %v466 = vadd.f32 %v430, %v450
        %v467 = vadd.f32 %v431, %v451
        %v468 = vadd.f32 %v432, %v452
        %v469 = vlaneseq
        %v470 = vshrl.u32 %v469, 7
        %v471 = vsub.s32 1, %v470
        %v472 = vrot.slane %v260, %v471
        %v473 = vmul.f32 %v303, %v472
        %v474 = vmul.f32 %v304, %v472
        %v475 = vmul.f32 %v305, %v472
        %v476 = vmul.f32 %v306, %v472
        %v477 = vmul.f32 %v307, %v472
        %v478 = vmul.f32 %v308, %v472
        %v479 = vmul.f32 %v309, %v472
        %v480 = vmul.f32 %v310, %v472
        %v481 = vmul.f32 %v311, %v472
        %v482 = vmul.f32 %v312, %v472
        %v483 = vmul.f32 %v313, %v472
        %v484 = vmul.f32 %v314, %v472
        %v485 = vmul.f32 %v315, %v472
        %v486 = vmul.f32 %v316, %v472
        %v487 = vmul.f32 %v317, %v472
        %v488 = vmul.f32 %v318, %v472
        %v489 = vadd.f32 %v453, %v473
        %v490 = vadd.f32 %v454, %v474
        %v491 = vadd.f32 %v455, %v475
        %v492 = vadd.f32 %v456, %v476
        %v493 = vadd.f32 %v457, %v477
        %v494 = vadd.f32 %v458, %v478
        %v495 = vadd.f32 %v459, %v479
        %v496 = vadd.f32 %v460, %v480
        %v497 = vadd.f32 %v461, %v481
        %v498 = vadd.f32 %v462, %v482
        %v499 = vadd.f32 %v463, %v483
        %v500 = vadd.f32 %v464, %v484
        %v501 = vadd.f32 %v465, %v485
        %v502 = vadd.f32 %v466, %v486
        %v503 = vadd.f32 %v467, %v487
        %v504 = vadd.f32 %v468, %v488
        %v505 = vlaneseq
        %v506 = vshrl.u32 %v505, 7
        %v507 = vsub.s32 2, %v506
        %v508 = vrot.slane %v260, %v507
        %v509 = vmul.f32 %v323, %v508
        %v510 = vmul.f32 %v324, %v508
        %v511 = vmul.f32 %v325, %v508
        %v512 = vmul.f32 %v326, %v508
        %v513 = vmul.f32 %v327, %v508
        %v514 = vmul.f32 %v328, %v508
        %v515 = vmul.f32 %v329, %v508
        %v516 = vmul.f32 %v330, %v508
        %v517 = vmul.f32 %v331, %v508
        %v518 = vmul.f32 %v332, %v508
        %v519 = vmul.f32 %v333, %v508
        %v520 = vmul.f32 %v334, %v508
        %v521 = vmul.f32 %v335, %v508
        %v522 = vmul.f32 %v336, %v508
        %v523 = vmul.f32 %v337, %v508
        %v524 = vmul.f32 %v338, %v508
        %v525 = vadd.f32 %v489, %v509
        %v526 = vadd.f32 %v490, %v510
        %v527 = vadd.f32 %v491, %v511
        %v528 = vadd.f32 %v492, %v512
        %v529 = vadd.f32 %v493, %v513
        %v530 = vadd.f32 %v494, %v514
        %v531 = vadd.f32 %v495, %v515
        %v532 = vadd.f32 %v496, %v516
        %v533 = vadd.f32 %v497, %v517
        %v534 = vadd.f32 %v498, %v518
        %v535 = vadd.f32 %v499, %v519
        %v536 = vadd.f32 %v500, %v520
        %v537 = vadd.f32 %v501, %v521
        %v538 = vadd.f32 %v502, %v522
        %v539 = vadd.f32 %v503, %v523
        %v540 = vadd.f32 %v504, %v524
        %v541 = vlaneseq
        %v542 = vshrl.u32 %v541, 7
        %v543 = vsub.s32 0, %v542
        %v544 = vrot.slane %v261, %v543
        %v545 = vmul.f32 %v285, %v544
        %v546 = vmul.f32 %v286, %v544
        %v547 = vmul.f32 %v287, %v544
        %v548 = vmul.f32 %v288, %v544
        %v549 = vmul.f32 %v289, %v544
        %v550 = vmul.f32 %v290, %v544
        %v551 = vmul.f32 %v291, %v544
        %v552 = vmul.f32 %v292, %v544
        %v553 = vmul.f32 %v293, %v544
        %v554 = vmul.f32 %v294, %v544
        %v555 = vmul.f32 %v295, %v544
        %v556 = vmul.f32 %v296, %v544
        %v557 = vmul.f32 %v297, %v544
        %v558 = vmul.f32 %v298, %v544
        %v559 = vmul.f32 %v299, %v544
        %v560 = vmul.f32 %v300, %v544
        %v561 = vadd.f32 %v525, %v545
        %v562 = vadd.f32 %v526, %v546
        %v563 = vadd.f32 %v527, %v547
        %v564 = vadd.f32 %v528, %v548
        %v565 = vadd.f32 %v529, %v549
        %v566 = vadd.f32 %v530, %v550
        %v567 = vadd.f32 %v531, %v551
        %v568 = vadd.f32 %v532, %v552
        %v569 = vadd.f32 %v533, %v553
        %v570 = vadd.f32 %v534, %v554
        %v571 = vadd.f32 %v535, %v555
        %v572 = vadd.f32 %v536, %v556
        %v573 = vadd.f32 %v537, %v557
        %v574 = vadd.f32 %v538, %v558
        %v575 = vadd.f32 %v539, %v559
        %v576 = vadd.f32 %v540, %v560
        %v577 = vlaneseq
        %v578 = vshrl.u32 %v577, 7
        %v579 = vsub.s32 1, %v578
        %v580 = vrot.slane %v261, %v579
        %v581 = vmul.f32 %v305, %v580
        %v582 = vmul.f32 %v306, %v580
        %v583 = vmul.f32 %v307, %v580
        %v584 = vmul.f32 %v308, %v580
        %v585 = vmul.f32 %v309, %v580
        %v586 = vmul.f32 %v310, %v580
        %v587 = vmul.f32 %v311, %v580
        %v588 = vmul.f32 %v312, %v580
        %v589 = vmul.f32 %v313, %v580
        %v590 = vmul.f32 %v314, %v580
        %v591 = vmul.f32 %v315, %v580
        %v592 = vmul.f32 %v316, %v580
        %v593 = vmul.f32 %v317, %v580
        %v594 = vmul.f32 %v318, %v580
        %v595 = vmul.f32 %v319, %v580
        %v596 = vmul.f32 %v320, %v580
        %v597 = vadd.f32 %v561, %v581
        %v598 = vadd.f32 %v562, %v582
        %v599 = vadd.f32 %v563, %v583
        %v600 = vadd.f32 %v564, %v584
        %v601 = vadd.f32 %v565, %v585
        %v602 = vadd.f32 %v566, %v586
        %v603 = vadd.f32 %v567, %v587
        %v604 = vadd.f32 %v568, %v588
        %v605 = vadd.f32 %v569, %v589
        %v606 = vadd.f32 %v570, %v590
        %v607 = vadd.f32 %v571, %v591
        %v608 = vadd.f32 %v572, %v592
        %v609 = vadd.f32 %v573, %v593
        %v610 = vadd.f32 %v574, %v594
        %v611 = vadd.f32 %v575, %v595
        %v612 = vadd.f32 %v576, %v596
        %v613 = vlaneseq
        %v614 = vshrl.u32 %v613, 7
        %v615 = vsub.s32 2, %v614
        %v616 = vrot.slane %v261, %v615
        %v617 = vmul.f32 %v325, %v616
        %v618 = vmul.f32 %v326, %v616
        %v619 = vmul.f32 %v327, %v616
        %v620 = vmul.f32 %v328, %v616
        %v621 = vmul.f32 %v329, %v616
        %v622 = vmul.f32 %v330, %v616
        %v623 = vmul.f32 %v331, %v616
        %v624 = vmul.f32 %v332, %v616
        %v625 = vmul.f32 %v333, %v616
        %v626 = vmul.f32 %v334, %v616
        %v627 = vmul.f32 %v335, %v616
        %v628 = vmul.f32 %v336, %v616
        %v629 = vmul.f32 %v337, %v616
        %v630 = vmul.f32 %v338, %v616
        %v631 = vmul.f32 %v339, %v616
        %v632 = vmul.f32 %v340, %v616
        %v633 = vadd.f32 %v597, %v617
        %v634 = vadd.f32 %v598, %v618
        %v635 = vadd.f32 %v599, %v619
        %v636 = vadd.f32 %v600, %v620
        %v637 = vadd.f32 %v601, %v621
        %v638 = vadd.f32 %v602, %v622
        %v639 = vadd.f32 %v603, %v623
        %v640 = vadd.f32 %v604, %v624
        %v641 = vadd.f32 %v605, %v625
        %v642 = vadd.f32 %v606, %v626
        %v643 = vadd.f32 %v607, %v627
        %v644 = vadd.f32 %v608, %v628
        %v645 = vadd.f32 %v609, %v629
        %v646 = vadd.f32 %v610, %v630
        %v647 = vadd.f32 %v611, %v631
        %v648 = vadd.f32 %v612, %v632
        %v650 = vlaneseq
        %v651 = vshrl.u32 %v650, 7
        %v652 = vsub.s32 0, %v651
        %v653 = vrot.slane %v278, %v652
        %655 = vmatprep.subr.mxu0 0.0
        %656 = vmatpush1.msra.mxu0 %v262
        %657 = vmatprep.subr.mxu0 0.0
        %658 = vmatpush1.msra.mxu0 %v263
        %659 = vmatprep.subr.mxu0 0.0
        %660 = vmatpush1.msra.mxu0 %v264
        %661 = vmatprep.subr.mxu0 0.0
        %662 = vmatpush1.msra.mxu0 %v265
        %663 = vmatprep.subr.mxu0 0.0
        %664 = vmatpush1.msra.mxu0 %v266
        %665 = vmatprep.subr.mxu0 0.0
        %666 = vmatpush1.msra.mxu0 %v267
        %667 = vmatprep.subr.mxu0 0.0
        %668 = vmatpush1.msra.mxu0 %v268
        %669 = vmatprep.subr.mxu0 0.0
        %670 = vmatpush1.msra.mxu0 %v269
        %671 = vmatprep.subr.mxu0 0.0
        %672 = vmatpush1.msra.mxu0 %v270
        %673 = vmatprep.subr.mxu0 0.0
        %674 = vmatpush1.msra.mxu0 %v271
        %675 = vmatprep.subr.mxu0 0.0
        %676 = vmatpush1.msra.mxu0 %v272
        %677 = vmatprep.subr.mxu0 0.0
        %678 = vmatpush1.msra.mxu0 %v273
        %679 = vmatprep.subr.mxu0 0.0
        %680 = vmatpush1.msra.mxu0 %v274
        %681 = vmatprep.subr.mxu0 0.0
        %682 = vmatpush1.msra.mxu0 %v275
        %683 = vmatprep.subr.mxu0 0.0
        %684 = vmatpush1.msra.mxu0 %v276
        %685 = vmatprep.subr.mxu0 0.0
        %686 = vmatpush1.msra.mxu0 %v277
        %687 = vmatprep.subr.mxu0 0.0
        %688 = vmatpush1.msra.mxu0 0.0
        %689 = vmatprep.subr.mxu0 0.0
        %690 = vmatpush1.msra.mxu0 0.0
        %691 = vmatprep.subr.mxu0 0.0
        %692 = vmatpush1.msra.mxu0 0.0
        %693 = vmatprep.subr.mxu0 0.0
        %694 = vmatpush1.msra.mxu0 0.0
        %695 = vmatprep.subr.mxu0 0.0
        %696 = vmatpush1.msra.mxu0 0.0
        %697 = vmatprep.subr.mxu0 0.0
        %698 = vmatpush1.msra.mxu0 0.0
        %699 = vmatprep.subr.mxu0 0.0
        %700 = vmatpush1.msra.mxu0 0.0
        %701 = vmatprep.subr.mxu0 0.0
        %702 = vmatpush1.msra.mxu0 0.0
        %703 = vmatprep.subr.mxu0 0.0
        %704 = vmatpush1.msra.mxu0 0.0
        %705 = vmatprep.subr.mxu0 0.0
        %706 = vmatpush1.msra.mxu0 0.0
        %707 = vmatprep.subr.mxu0 0.0
        %708 = vmatpush1.msra.mxu0 0.0
        %709 = vmatprep.subr.mxu0 0.0
        %710 = vmatpush1.msra.mxu0 0.0
        %711 = vmatprep.subr.mxu0 0.0
        %712 = vmatpush1.msra.mxu0 0.0
        %713 = vmatprep.subr.mxu0 0.0
        %714 = vmatpush1.msra.mxu0 0.0
        %715 = vmatprep.subr.mxu0 0.0
        %716 = vmatpush1.msra.mxu0 0.0
        %717 = vmatprep.subr.mxu0 0.0
        %718 = vmatpush1.msra.mxu0 0.0
        %719 = vmatprep.mubr.f32.mxu0 0.0
        %720 = vmatmul.mubr.f32.gmra.mrb[0].mxu0 %v633
        %v721 = vpop.f32.mrb[0].mxu0
        %v722 = vadd.f32 %v653, %v721
        %v723 = vpop.f32.mrb[0].mxu0
        %724 = vmatprep.mubr.f32.mxu0 0.0
        %725 = vmatmul.mubr.f32.gmra.mrb[0].mxu0 %v634
        %v726 = vpop.f32.mrb[0].mxu0
        %v727 = vadd.f32 %v653, %v726
        %v728 = vpop.f32.mrb[0].mxu0
        %729 = vmatprep.mubr.f32.mxu0 0.0
        %730 = vmatmul.mubr.f32.gmra.mrb[0].mxu0 %v635
        %v731 = vpop.f32.mrb[0].mxu0
        %v732 = vadd.f32 %v653, %v731
        %v733 = vpop.f32.mrb[0].mxu0
        %734 = vmatprep.mubr.f32.mxu0 0.0
        %735 = vmatmul.mubr.f32.gmra.mrb[0].mxu0 %v636
        %v736 = vpop.f32.mrb[0].mxu0
        %v737 = vadd.f32 %v653, %v736
        %v738 = vpop.f32.mrb[0].mxu0
        %739 = vmatprep.mubr.f32.mxu0 0.0
        %740 = vmatmul.mubr.f32.gmra.mrb[0].mxu0 %v637
        %v741 = vpop.f32.mrb[0].mxu0
        %v742 = vadd.f32 %v653, %v741
        %v743 = vpop.f32.mrb[0].mxu0
        %744 = vmatprep.mubr.f32.mxu0 0.0
        %745 = vmatmul.mubr.f32.gmra.mrb[0].mxu0 %v638
        %v746 = vpop.f32.mrb[0].mxu0
        %v747 = vadd.f32 %v653, %v746
        %v748 = vpop.f32.mrb[0].mxu0
        %749 = vmatprep.mubr.f32.mxu0 0.0
        %750 = vmatmul.mubr.f32.gmra.mrb[0].mxu0 %v639
        %v751 = vpop.f32.mrb[0].mxu0
        %v752 = vadd.f32 %v653, %v751
        %v753 = vpop.f32.mrb[0].mxu0
        %754 = vmatprep.mubr.f32.mxu0 0.0
        %755 = vmatmul.mubr.f32.gmra.mrb[0].mxu0 %v640
        %v756 = vpop.f32.mrb[0].mxu0
        %v757 = vadd.f32 %v653, %v756
        %v758 = vpop.f32.mrb[0].mxu0
        %759 = vmatprep.mubr.f32.mxu0 0.0
        %760 = vmatmul.mubr.f32.gmra.mrb[0].mxu0 %v641
        %v761 = vpop.f32.mrb[0].mxu0
        %v762 = vadd.f32 %v653, %v761
        %v763 = vpop.f32.mrb[0].mxu0
        %764 = vmatprep.mubr.f32.mxu0 0.0
        %765 = vmatmul.mubr.f32.gmra.mrb[0].mxu0 %v642
        %v766 = vpop.f32.mrb[0].mxu0
        %v767 = vadd.f32 %v653, %v766
        %v768 = vpop.f32.mrb[0].mxu0
        %769 = vmatprep.mubr.f32.mxu0 0.0
        %770 = vmatmul.mubr.f32.gmra.mrb[0].mxu0 %v643
        %v771 = vpop.f32.mrb[0].mxu0
        %v772 = vadd.f32 %v653, %v771
        %v773 = vpop.f32.mrb[0].mxu0
        %774 = vmatprep.mubr.f32.mxu0 0.0
        %775 = vmatmul.mubr.f32.gmra.mrb[0].mxu0 %v644
        %v776 = vpop.f32.mrb[0].mxu0
        %v777 = vadd.f32 %v653, %v776
        %v778 = vpop.f32.mrb[0].mxu0
        %779 = vmatprep.mubr.f32.mxu0 0.0
        %780 = vmatmul.mubr.f32.gmra.mrb[0].mxu0 %v645
        %v781 = vpop.f32.mrb[0].mxu0
        %v782 = vadd.f32 %v653, %v781
        %v783 = vpop.f32.mrb[0].mxu0
        %784 = vmatprep.mubr.f32.mxu0 0.0
        %785 = vmatmul.mubr.f32.gmra.mrb[0].mxu0 %v646
        %v786 = vpop.f32.mrb[0].mxu0
        %v787 = vadd.f32 %v653, %v786
        %v788 = vpop.f32.mrb[0].mxu0
        %789 = vmatprep.mubr.f32.mxu0 0.0
        %790 = vmatmul.mubr.f32.gmra.mrb[0].mxu0 %v647
        %v791 = vpop.f32.mrb[0].mxu0
        %v792 = vadd.f32 %v653, %v791
        %v793 = vpop.f32.mrb[0].mxu0
        %794 = vmatprep.mubr.f32.mxu0 0.0
        %795 = vmatmul.mubr.f32.gmra.mrb[0].mxu0 %v648
        %v796 = vpop.f32.mrb[0].mxu0
        %v797 = vadd.f32 %v653, %v796
        %v798 = vpop.f32.mrb[0].mxu0
        %799 = vdwg.mxu0
        %800 = vst [vmem:[%s193] sm:$0xff] %v722
        %801 = vst [vmem:[%s193 + $0x8] sm:$0xff] %v727
        %802 = vst [vmem:[%s193 + $0x10] sm:$0xff] %v732
        %803 = vst [vmem:[%s193 + $0x18] sm:$0xff] %v737
        %804 = vst [vmem:[%s193 + $0x20] sm:$0xff] %v742
        %805 = vst [vmem:[%s193 + $0x28] sm:$0xff] %v747
        %806 = vst [vmem:[%s193 + $0x30] sm:$0xff] %v752
        %807 = vst [vmem:[%s193 + $0x38] sm:$0xff] %v757
        %808 = vst [vmem:[%s193 + $0x40] sm:$0xff] %v762
        %809 = vst [vmem:[%s193 + $0x48] sm:$0xff] %v767
        %810 = vst [vmem:[%s193 + $0x50] sm:$0xff] %v772
        %811 = vst [vmem:[%s193 + $0x58] sm:$0xff] %v777
        %812 = vst [vmem:[%s193 + $0x60] sm:$0xff] %v782
        %813 = vst [vmem:[%s193 + $0x68] sm:$0xff] %v787
        %814 = vst [vmem:[%s193 + $0x70] sm:$0xff] %v792
        %815 = vst [vmem:[%s193 + $0x78] sm:$0xff] %v797
        %s816 = sadd.s32 192, %s279
        %s817 = scalar_lea.vmem [#allocation2], %s816
        %v818 = vld [vmem:[%s817] sm:$0xff]
        %v819 = vld [vmem:[%s817 + $0x8] sm:$0xff]
        %v820 = vld [vmem:[%s817 + $0x18] sm:$0xff]
        %v821 = vld [vmem:[%s817 + $0x20] sm:$0xff]
        %v822 = vld [vmem:[%s817 + $0x30] sm:$0xff]
        %v823 = vld [vmem:[%s817 + $0x38] sm:$0xff]
        %v824 = vld [vmem:[%s817 + $0x48] sm:$0xff]
        %v825 = vld [vmem:[%s817 + $0x50] sm:$0xff]
        %v826 = vld [vmem:[%s817 + $0x60] sm:$0xff]
        %v827 = vld [vmem:[%s817 + $0x68] sm:$0xff]
        %v828 = vld [vmem:[%s817 + $0x78] sm:$0xff]
        %v829 = vld [vmem:[%s817 + $0x80] sm:$0xff]
        %v830 = vld [vmem:[%s817 + $0x90] sm:$0xff]
        %v831 = vld [vmem:[%s817 + $0x98] sm:$0xff]
        %v832 = vld [vmem:[%s817 + $0xa8] sm:$0xff]
        %v833 = vld [vmem:[%s817 + $0xb0] sm:$0xff]
        %v834 = vld [vmem:[%s817 + $0xc0] sm:$0xff]
        %v835 = vld [vmem:[%s817 + $0xc8] sm:$0xff]
        %v836 = vld [vmem:[%s817 + $0xd8] sm:$0xff]
        %v837 = vld [vmem:[%s817 + $0xe0] sm:$0xff]
        %v838 = vld [vmem:[%s817 + $0x1] sm:$0xff]
        %v839 = vld [vmem:[%s817 + $0x9] sm:$0xff]
        %v840 = vld [vmem:[%s817 + $0x19] sm:$0xff]
        %v841 = vld [vmem:[%s817 + $0x21] sm:$0xff]
        %v842 = vld [vmem:[%s817 + $0x31] sm:$0xff]
        %v843 = vld [vmem:[%s817 + $0x39] sm:$0xff]
        %v844 = vld [vmem:[%s817 + $0x49] sm:$0xff]
        %v845 = vld [vmem:[%s817 + $0x51] sm:$0xff]
        %v846 = vld [vmem:[%s817 + $0x61] sm:$0xff]
        %v847 = vld [vmem:[%s817 + $0x69] sm:$0xff]
        %v848 = vld [vmem:[%s817 + $0x79] sm:$0xff]
        %v849 = vld [vmem:[%s817 + $0x81] sm:$0xff]
        %v850 = vld [vmem:[%s817 + $0x91] sm:$0xff]
        %v851 = vld [vmem:[%s817 + $0x99] sm:$0xff]
        %v852 = vld [vmem:[%s817 + $0xa9] sm:$0xff]
        %v853 = vld [vmem:[%s817 + $0xb1] sm:$0xff]
        %v854 = vld [vmem:[%s817 + $0xc1] sm:$0xff]
        %v855 = vld [vmem:[%s817 + $0xc9] sm:$0xff]
        %v856 = vld [vmem:[%s817 + $0xd9] sm:$0xff]
        %v857 = vld [vmem:[%s817 + $0xe1] sm:$0xff]
        %v858 = vld [vmem:[%s817 + $0x2] sm:$0xff]
        %v859 = vld [vmem:[%s817 + $0xa] sm:$0xff]
        %v860 = vld [vmem:[%s817 + $0x1a] sm:$0xff]
        %v861 = vld [vmem:[%s817 + $0x22] sm:$0xff]
        %v862 = vld [vmem:[%s817 + $0x32] sm:$0xff]
        %v863 = vld [vmem:[%s817 + $0x3a] sm:$0xff]
        %v864 = vld [vmem:[%s817 + $0x4a] sm:$0xff]
        %v865 = vld [vmem:[%s817 + $0x52] sm:$0xff]
        %v866 = vld [vmem:[%s817 + $0x62] sm:$0xff]
        %v867 = vld [vmem:[%s817 + $0x6a] sm:$0xff]
        %v868 = vld [vmem:[%s817 + $0x7a] sm:$0xff]
        %v869 = vld [vmem:[%s817 + $0x82] sm:$0xff]
        %v870 = vld [vmem:[%s817 + $0x92] sm:$0xff]
        %v871 = vld [vmem:[%s817 + $0x9a] sm:$0xff]
        %v872 = vld [vmem:[%s817 + $0xaa] sm:$0xff]
        %v873 = vld [vmem:[%s817 + $0xb2] sm:$0xff]
        %v874 = vld [vmem:[%s817 + $0xc2] sm:$0xff]
        %v875 = vld [vmem:[%s817 + $0xca] sm:$0xff]
        %v876 = vld [vmem:[%s817 + $0xda] sm:$0xff]
        %v877 = vld [vmem:[%s817 + $0xe2] sm:$0xff]
        %v878 = vmul.f32 %v818, %v344
        %v879 = vmul.f32 %v819, %v344
        %v880 = vmul.f32 %v820, %v344
        %v881 = vmul.f32 %v821, %v344
        %v882 = vmul.f32 %v822, %v344
        %v883 = vmul.f32 %v823, %v344
        %v884 = vmul.f32 %v824, %v344
        %v885 = vmul.f32 %v825, %v344
        %v886 = vmul.f32 %v826, %v344
        %v887 = vmul.f32 %v827, %v344
        %v888 = vmul.f32 %v828, %v344
        %v889 = vmul.f32 %v829, %v344
        %v890 = vmul.f32 %v830, %v344
        %v891 = vmul.f32 %v831, %v344
        %v892 = vmul.f32 %v832, %v344
        %v893 = vmul.f32 %v833, %v344
        %v894 = vmul.f32 %v838, %v364
        %v895 = vmul.f32 %v839, %v364
        %v896 = vmul.f32 %v840, %v364
        %v897 = vmul.f32 %v841, %v364
        %v898 = vmul.f32 %v842, %v364
        %v899 = vmul.f32 %v843, %v364
        %v900 = vmul.f32 %v844, %v364
        %v901 = vmul.f32 %v845, %v364
        %v902 = vmul.f32 %v846, %v364
        %v903 = vmul.f32 %v847, %v364
        %v904 = vmul.f32 %v848, %v364
        %v905 = vmul.f32 %v849, %v364
        %v906 = vmul.f32 %v850, %v364
        %v907 = vmul.f32 %v851, %v364
        %v908 = vmul.f32 %v852, %v364
        %v909 = vmul.f32 %v853, %v364
        %v910 = vadd.f32 %v878, %v894
        %v911 = vadd.f32 %v879, %v895
        %v912 = vadd.f32 %v880, %v896
        %v913 = vadd.f32 %v881, %v897
        %v914 = vadd.f32 %v882, %v898
        %v915 = vadd.f32 %v883, %v899
        %v916 = vadd.f32 %v884, %v900
        %v917 = vadd.f32 %v885, %v901
        %v918 = vadd.f32 %v886, %v902
        %v919 = vadd.f32 %v887, %v903
        %v920 = vadd.f32 %v888, %v904
        %v921 = vadd.f32 %v889, %v905
        %v922 = vadd.f32 %v890, %v906
        %v923 = vadd.f32 %v891, %v907
        %v924 = vadd.f32 %v892, %v908
        %v925 = vadd.f32 %v893, %v909
        %v926 = vmul.f32 %v858, %v400
        %v927 = vmul.f32 %v859, %v400
        %v928 = vmul.f32 %v860, %v400
        %v929 = vmul.f32 %v861, %v400
        %v930 = vmul.f32 %v862, %v400
        %v931 = vmul.f32 %v863, %v400
        %v932 = vmul.f32 %v864, %v400
        %v933 = vmul.f32 %v865, %v400
        %v934 = vmul.f32 %v866, %v400
        %v935 = vmul.f32 %v867, %v400
        %v936 = vmul.f32 %v868, %v400
        %v937 = vmul.f32 %v869, %v400
        %v938 = vmul.f32 %v870, %v400
        %v939 = vmul.f32 %v871, %v400
        %v940 = vmul.f32 %v872, %v400
        %v941 = vmul.f32 %v873, %v400
        %v942 = vadd.f32 %v910, %v926
        %v943 = vadd.f32 %v911, %v927
        %v944 = vadd.f32 %v912, %v928
        %v945 = vadd.f32 %v913, %v929
        %v946 = vadd.f32 %v914, %v930
        %v947 = vadd.f32 %v915, %v931
        %v948 = vadd.f32 %v916, %v932
        %v949 = vadd.f32 %v917, %v933
        %v950 = vadd.f32 %v918, %v934
        %v951 = vadd.f32 %v919, %v935
        %v952 = vadd.f32 %v920, %v936
        %v953 = vadd.f32 %v921, %v937
        %v954 = vadd.f32 %v922, %v938
        %v955 = vadd.f32 %v923, %v939
        %v956 = vadd.f32 %v924, %v940
        %v957 = vadd.f32 %v925, %v941
        %v958 = vmul.f32 %v820, %v436
        %v959 = vmul.f32 %v821, %v436
        %v960 = vmul.f32 %v822, %v436
        %v961 = vmul.f32 %v823, %v436
        %v962 = vmul.f32 %v824, %v436
        %v963 = vmul.f32 %v825, %v436
        %v964 = vmul.f32 %v826, %v436
        %v965 = vmul.f32 %v827, %v436
        %v966 = vmul.f32 %v828, %v436
        %v967 = vmul.f32 %v829, %v436
        %v968 = vmul.f32 %v830, %v436
        %v969 = vmul.f32 %v831, %v436
        %v970 = vmul.f32 %v832, %v436
        %v971 = vmul.f32 %v833, %v436
        %v972 = vmul.f32 %v834, %v436
        %v973 = vmul.f32 %v835, %v436
        %v974 = vadd.f32 %v942, %v958
        %v975 = vadd.f32 %v943, %v959
        %v976 = vadd.f32 %v944, %v960
        %v977 = vadd.f32 %v945, %v961
        %v978 = vadd.f32 %v946, %v962
        %v979 = vadd.f32 %v947, %v963
        %v980 = vadd.f32 %v948, %v964
        %v981 = vadd.f32 %v949, %v965
        %v982 = vadd.f32 %v950, %v966
        %v983 = vadd.f32 %v951, %v967
        %v984 = vadd.f32 %v952, %v968
        %v985 = vadd.f32 %v953, %v969
        %v986 = vadd.f32 %v954, %v970
        %v987 = vadd.f32 %v955, %v971
        %v988 = vadd.f32 %v956, %v972
        %v989 = vadd.f32 %v957, %v973
        %v990 = vmul.f32 %v840, %v472
        %v991 = vmul.f32 %v841, %v472
        %v992 = vmul.f32 %v842, %v472
        %v993 = vmul.f32 %v843, %v472
        %v994 = vmul.f32 %v844, %v472
        %v995 = vmul.f32 %v845, %v472
        %v996 = vmul.f32 %v846, %v472
        %v997 = vmul.f32 %v847, %v472
        %v998 = vmul.f32 %v848, %v472
        %v999 = vmul.f32 %v849, %v472
        %v1000 = vmul.f32 %v850, %v472
        %v1001 = vmul.f32 %v851, %v472
        %v1002 = vmul.f32 %v852, %v472
        %v1003 = vmul.f32 %v853, %v472
        %v1004 = vmul.f32 %v854, %v472
        %v1005 = vmul.f32 %v855, %v472
        %v1006 = vadd.f32 %v974, %v990
        %v1007 = vadd.f32 %v975, %v991
        %v1008 = vadd.f32 %v976, %v992
        %v1009 = vadd.f32 %v977, %v993
        %v1010 = vadd.f32 %v978, %v994
        %v1011 = vadd.f32 %v979, %v995
        %v1012 = vadd.f32 %v980, %v996
        %v1013 = vadd.f32 %v981, %v997
        %v1014 = vadd.f32 %v982, %v998
        %v1015 = vadd.f32 %v983, %v999
        %v1016 = vadd.f32 %v984, %v1000
        %v1017 = vadd.f32 %v985, %v1001
        %v1018 = vadd.f32 %v986, %v1002
        %v1019 = vadd.f32 %v987, %v1003
        %v1020 = vadd.f32 %v988, %v1004
        %v1021 = vadd.f32 %v989, %v1005
        %v1022 = vmul.f32 %v860, %v508
        %v1023 = vmul.f32 %v861, %v508
        %v1024 = vmul.f32 %v862, %v508
        %v1025 = vmul.f32 %v863, %v508
        %v1026 = vmul.f32 %v864, %v508
        %v1027 = vmul.f32 %v865, %v508
        %v1028 = vmul.f32 %v866, %v508
        %v1029 = vmul.f32 %v867, %v508
        %v1030 = vmul.f32 %v868, %v508
        %v1031 = vmul.f32 %v869, %v508
        %v1032 = vmul.f32 %v870, %v508
        %v1033 = vmul.f32 %v871, %v508
        %v1034 = vmul.f32 %v872, %v508
        %v1035 = vmul.f32 %v873, %v508
        %v1036 = vmul.f32 %v874, %v508
        %v1037 = vmul.f32 %v875, %v508
        %v1038 = vadd.f32 %v1006, %v1022
        %v1039 = vadd.f32 %v1007, %v1023
        %v1040 = vadd.f32 %v1008, %v1024
        %v1041 = vadd.f32 %v1009, %v1025
        %v1042 = vadd.f32 %v1010, %v1026
        %v1043 = vadd.f32 %v1011, %v1027
        %v1044 = vadd.f32 %v1012, %v1028
        %v1045 = vadd.f32 %v1013, %v1029
        %v1046 = vadd.f32 %v1014, %v1030
        %v1047 = vadd.f32 %v1015, %v1031
        %v1048 = vadd.f32 %v1016, %v1032
        %v1049 = vadd.f32 %v1017, %v1033
        %v1050 = vadd.f32 %v1018, %v1034
        %v1051 = vadd.f32 %v1019, %v1035
        %v1052 = vadd.f32 %v1020, %v1036
        %v1053 = vadd.f32 %v1021, %v1037
        %v1054 = vmul.f32 %v822, %v544
        %v1055 = vmul.f32 %v823, %v544
        %v1056 = vmul.f32 %v824, %v544
        %v1057 = vmul.f32 %v825, %v544
        %v1058 = vmul.f32 %v826, %v544
        %v1059 = vmul.f32 %v827, %v544
        %v1060 = vmul.f32 %v828, %v544
        %v1061 = vmul.f32 %v829, %v544
        %v1062 = vmul.f32 %v830, %v544
        %v1063 = vmul.f32 %v831, %v544
        %v1064 = vmul.f32 %v832, %v544
        %v1065 = vmul.f32 %v833, %v544
        %v1066 = vmul.f32 %v834, %v544
        %v1067 = vmul.f32 %v835, %v544
        %v1068 = vmul.f32 %v836, %v544
        %v1069 = vmul.f32 %v837, %v544
        %v1070 = vadd.f32 %v1038, %v1054
        %v1071 = vadd.f32 %v1039, %v1055
        %v1072 = vadd.f32 %v1040, %v1056
        %v1073 = vadd.f32 %v1041, %v1057
        %v1074 = vadd.f32 %v1042, %v1058
        %v1075 = vadd.f32 %v1043, %v1059
        %v1076 = vadd.f32 %v1044, %v1060
        %v1077 = vadd.f32 %v1045, %v1061
        %v1078 = vadd.f32 %v1046, %v1062
        %v1079 = vadd.f32 %v1047, %v1063
        %v1080 = vadd.f32 %v1048, %v1064
        %v1081 = vadd.f32 %v1049, %v1065
        %v1082 = vadd.f32 %v1050, %v1066
        %v1083 = vadd.f32 %v1051, %v1067
        %v1084 = vadd.f32 %v1052, %v1068
        %v1085 = vadd.f32 %v1053, %v1069
        %v1086 = vmul.f32 %v842, %v580
        %v1087 = vmul.f32 %v843, %v580
        %v1088 = vmul.f32 %v844, %v580
        %v1089 = vmul.f32 %v845, %v580
        %v1090 = vmul.f32 %v846, %v580
        %v1091 = vmul.f32 %v847, %v580
        %v1092 = vmul.f32 %v848, %v580
        %v1093 = vmul.f32 %v849, %v580
        %v1094 = vmul.f32 %v850, %v580
        %v1095 = vmul.f32 %v851, %v580
        %v1096 = vmul.f32 %v852, %v580
        %v1097 = vmul.f32 %v853, %v580
        %v1098 = vmul.f32 %v854, %v580
        %v1099 = vmul.f32 %v855, %v580
        %v1100 = vmul.f32 %v856, %v580
        %v1101 = vmul.f32 %v857, %v580
        %v1102 = vadd.f32 %v1070, %v1086
        %v1103 = vadd.f32 %v1071, %v1087
        %v1104 = vadd.f32 %v1072, %v1088
        %v1105 = vadd.f32 %v1073, %v1089
        %v1106 = vadd.f32 %v1074, %v1090
        %v1107 = vadd.f32 %v1075, %v1091
        %v1108 = vadd.f32 %v1076, %v1092
        %v1109 = vadd.f32 %v1077, %v1093
        %v1110 = vadd.f32 %v1078, %v1094
        %v1111 = vadd.f32 %v1079, %v1095
        %v1112 = vadd.f32 %v1080, %v1096
        %v1113 = vadd.f32 %v1081, %v1097
        %v1114 = vadd.f32 %v1082, %v1098
        %v1115 = vadd.f32 %v1083, %v1099
        %v1116 = vadd.f32 %v1084, %v1100
        %v1117 = vadd.f32 %v1085, %v1101
        %v1118 = vmul.f32 %v862, %v616
        %v1119 = vmul.f32 %v863, %v616
        %v1120 = vmul.f32 %v864, %v616
        %v1121 = vmul.f32 %v865, %v616
        %v1122 = vmul.f32 %v866, %v616
        %v1123 = vmul.f32 %v867, %v616
        %v1124 = vmul.f32 %v868, %v616
        %v1125 = vmul.f32 %v869, %v616
        %v1126 = vmul.f32 %v870, %v616
        %v1127 = vmul.f32 %v871, %v616
        %v1128 = vmul.f32 %v872, %v616
        %v1129 = vmul.f32 %v873, %v616
        %v1130 = vmul.f32 %v874, %v616
        %v1131 = vmul.f32 %v875, %v616
        %v1132 = vmul.f32 %v876, %v616
        %v1133 = vmul.f32 %v877, %v616
        %v1134 = vadd.f32 %v1102, %v1118
        %v1135 = vadd.f32 %v1103, %v1119
        %v1136 = vadd.f32 %v1104, %v1120
        %v1137 = vadd.f32 %v1105, %v1121
        %v1138 = vadd.f32 %v1106, %v1122
        %v1139 = vadd.f32 %v1107, %v1123
        %v1140 = vadd.f32 %v1108, %v1124
        %v1141 = vadd.f32 %v1109, %v1125
        %v1142 = vadd.f32 %v1110, %v1126
        %v1143 = vadd.f32 %v1111, %v1127
        %v1144 = vadd.f32 %v1112, %v1128
        %v1145 = vadd.f32 %v1113, %v1129
        %v1146 = vadd.f32 %v1114, %v1130
        %v1147 = vadd.f32 %v1115, %v1131
        %v1148 = vadd.f32 %v1116, %v1132
        %v1149 = vadd.f32 %v1117, %v1133
        %1150 = vmatprep.subr.mxu0 0.0
        %1151 = vmatpush1.msra.mxu0 %v262
        %1152 = vmatprep.subr.mxu0 0.0
        %1153 = vmatpush1.msra.mxu0 %v263
        %1154 = vmatprep.subr.mxu0 0.0
        %1155 = vmatpush1.msra.mxu0 %v264
        %1156 = vmatprep.subr.mxu0 0.0
        %1157 = vmatpush1.msra.mxu0 %v265
        %1158 = vmatprep.subr.mxu0 0.0
        %1159 = vmatpush1.msra.mxu0 %v266
        %1160 = vmatprep.subr.mxu0 0.0
        %1161 = vmatpush1.msra.mxu0 %v267
        %1162 = vmatprep.subr.mxu0 0.0
        %1163 = vmatpush1.msra.mxu0 %v268
        %1164 = vmatprep.subr.mxu0 0.0
        %1165 = vmatpush1.msra.mxu0 %v269
        %1166 = vmatprep.subr.mxu0 0.0
        %1167 = vmatpush1.msra.mxu0 %v270
        %1168 = vmatprep.subr.mxu0 0.0
        %1169 = vmatpush1.msra.mxu0 %v271
        %1170 = vmatprep.subr.mxu0 0.0
        %1171 = vmatpush1.msra.mxu0 %v272
        %1172 = vmatprep.subr.mxu0 0.0
        %1173 = vmatpush1.msra.mxu0 %v273
        %1174 = vmatprep.subr.mxu0 0.0
        %1175 = vmatpush1.msra.mxu0 %v274
        %1176 = vmatprep.subr.mxu0 0.0
        %1177 = vmatpush1.msra.mxu0 %v275
        %1178 = vmatprep.subr.mxu0 0.0
        %1179 = vmatpush1.msra.mxu0 %v276
        %1180 = vmatprep.subr.mxu0 0.0
        %1181 = vmatpush1.msra.mxu0 %v277
        %1182 = vmatprep.subr.mxu0 0.0
        %1183 = vmatpush1.msra.mxu0 0.0
        %1184 = vmatprep.subr.mxu0 0.0
        %1185 = vmatpush1.msra.mxu0 0.0
        %1186 = vmatprep.subr.mxu0 0.0
        %1187 = vmatpush1.msra.mxu0 0.0
        %1188 = vmatprep.subr.mxu0 0.0
        %1189 = vmatpush1.msra.mxu0 0.0
        %1190 = vmatprep.subr.mxu0 0.0
        %1191 = vmatpush1.msra.mxu0 0.0
        %1192 = vmatprep.subr.mxu0 0.0
        %1193 = vmatpush1.msra.mxu0 0.0
        %1194 = vmatprep.subr.mxu0 0.0
        %1195 = vmatpush1.msra.mxu0 0.0
        %1196 = vmatprep.subr.mxu0 0.0
        %1197 = vmatpush1.msra.mxu0 0.0
        %1198 = vmatprep.subr.mxu0 0.0
        %1199 = vmatpush1.msra.mxu0 0.0
        %1200 = vmatprep.subr.mxu0 0.0
        %1201 = vmatpush1.msra.mxu0 0.0
        %1202 = vmatprep.subr.mxu0 0.0
        %1203 = vmatpush1.msra.mxu0 0.0
        %1204 = vmatprep.subr.mxu0 0.0
        %1205 = vmatpush1.msra.mxu0 0.0
        %1206 = vmatprep.subr.mxu0 0.0
        %1207 = vmatpush1.msra.mxu0 0.0
        %1208 = vmatprep.subr.mxu0 0.0
        %1209 = vmatpush1.msra.mxu0 0.0
        %1210 = vmatprep.subr.mxu0 0.0
        %1211 = vmatpush1.msra.mxu0 0.0
        %1212 = vmatprep.subr.mxu0 0.0
        %1213 = vmatpush1.msra.mxu0 0.0
        %1214 = vmatprep.mubr.f32.mxu0 0.0
        %1215 = vmatmul.mubr.f32.gmra.mrb[0].mxu0 %v1134
        %v1216 = vpop.f32.mrb[0].mxu0
        %v1217 = vadd.f32 %v653, %v1216
        %v1218 = vpop.f32.mrb[0].mxu0
        %1219 = vmatprep.mubr.f32.mxu0 0.0
        %1220 = vmatmul.mubr.f32.gmra.mrb[0].mxu0 %v1135
        %v1221 = vpop.f32.mrb[0].mxu0
        %v1222 = vadd.f32 %v653, %v1221
        %v1223 = vpop.f32.mrb[0].mxu0
        %1224 = vmatprep.mubr.f32.mxu0 0.0
        %1225 = vmatmul.mubr.f32.gmra.mrb[0].mxu0 %v1136
        %v1226 = vpop.f32.mrb[0].mxu0
        %v1227 = vadd.f32 %v653, %v1226
        %v1228 = vpop.f32.mrb[0].mxu0
        %1229 = vmatprep.mubr.f32.mxu0 0.0
        %1230 = vmatmul.mubr.f32.gmra.mrb[0].mxu0 %v1137
        %v1231 = vpop.f32.mrb[0].mxu0
        %v1232 = vadd.f32 %v653, %v1231
        %v1233 = vpop.f32.mrb[0].mxu0
        %1234 = vmatprep.mubr.f32.mxu0 0.0
        %1235 = vmatmul.mubr.f32.gmra.mrb[0].mxu0 %v1138
        %v1236 = vpop.f32.mrb[0].mxu0
        %v1237 = vadd.f32 %v653, %v1236
        %v1238 = vpop.f32.mrb[0].mxu0
        %1239 = vmatprep.mubr.f32.mxu0 0.0
        %1240 = vmatmul.mubr.f32.gmra.mrb[0].mxu0 %v1139
        %v1241 = vpop.f32.mrb[0].mxu0
        %v1242 = vadd.f32 %v653, %v1241
        %v1243 = vpop.f32.mrb[0].mxu0
        %1244 = vmatprep.mubr.f32.mxu0 0.0
        %1245 = vmatmul.mubr.f32.gmra.mrb[0].mxu0 %v1140
        %v1246 = vpop.f32.mrb[0].mxu0
        %v1247 = vadd.f32 %v653, %v1246
        %v1248 = vpop.f32.mrb[0].mxu0
        %1249 = vmatprep.mubr.f32.mxu0 0.0
        %1250 = vmatmul.mubr.f32.gmra.mrb[0].mxu0 %v1141
        %v1251 = vpop.f32.mrb[0].mxu0
        %v1252 = vadd.f32 %v653, %v1251
        %v1253 = vpop.f32.mrb[0].mxu0
        %1254 = vmatprep.mubr.f32.mxu0 0.0
        %1255 = vmatmul.mubr.f32.gmra.mrb[0].mxu0 %v1142
        %v1256 = vpop.f32.mrb[0].mxu0
        %v1257 = vadd.f32 %v653, %v1256
        %v1258 = vpop.f32.mrb[0].mxu0
        %1259 = vmatprep.mubr.f32.mxu0 0.0
        %1260 = vmatmul.mubr.f32.gmra.mrb[0].mxu0 %v1143
        %v1261 = vpop.f32.mrb[0].mxu0
        %v1262 = vadd.f32 %v653, %v1261
        %v1263 = vpop.f32.mrb[0].mxu0
        %1264 = vmatprep.mubr.f32.mxu0 0.0
        %1265 = vmatmul.mubr.f32.gmra.mrb[0].mxu0 %v1144
        %v1266 = vpop.f32.mrb[0].mxu0
        %v1267 = vadd.f32 %v653, %v1266
        %v1268 = vpop.f32.mrb[0].mxu0
        %1269 = vmatprep.mubr.f32.mxu0 0.0
        %1270 = vmatmul.mubr.f32.gmra.mrb[0].mxu0 %v1145
        %v1271 = vpop.f32.mrb[0].mxu0
        %v1272 = vadd.f32 %v653, %v1271
        %v1273 = vpop.f32.mrb[0].mxu0
        %1274 = vmatprep.mubr.f32.mxu0 0.0
        %1275 = vmatmul.mubr.f32.gmra.mrb[0].mxu0 %v1146
        %v1276 = vpop.f32.mrb[0].mxu0
        %v1277 = vadd.f32 %v653, %v1276
        %v1278 = vpop.f32.mrb[0].mxu0
        %1279 = vmatprep.mubr.f32.mxu0 0.0
        %1280 = vmatmul.mubr.f32.gmra.mrb[0].mxu0 %v1147
        %v1281 = vpop.f32.mrb[0].mxu0
        %v1282 = vadd.f32 %v653, %v1281
        %v1283 = vpop.f32.mrb[0].mxu0
        %1284 = vmatprep.mubr.f32.mxu0 0.0
        %1285 = vmatmul.mubr.f32.gmra.mrb[0].mxu0 %v1148
        %v1286 = vpop.f32.mrb[0].mxu0
        %v1287 = vadd.f32 %v653, %v1286
        %v1288 = vpop.f32.mrb[0].mxu0
        %1289 = vmatprep.mubr.f32.mxu0 0.0
        %1290 = vmatmul.mubr.f32.gmra.mrb[0].mxu0 %v1149
        %v1291 = vpop.f32.mrb[0].mxu0
        %v1292 = vadd.f32 %v653, %v1291
        %v1293 = vpop.f32.mrb[0].mxu0
        %1294 = vdwg.mxu0
        %s1295 = scalar_lea.vmem %s193, 128 [#allocation9]
        %1296 = vst [vmem:[%s1295] sm:$0xff] %v1217
        %1297 = vst [vmem:[%s1295 + $0x8] sm:$0xff] %v1222
        %1298 = vst [vmem:[%s1295 + $0x10] sm:$0xff] %v1227
        %1299 = vst [vmem:[%s1295 + $0x18] sm:$0xff] %v1232
        %1300 = vst [vmem:[%s1295 + $0x20] sm:$0xff] %v1237
        %1301 = vst [vmem:[%s1295 + $0x28] sm:$0xff] %v1242
        %1302 = vst [vmem:[%s1295 + $0x30] sm:$0xff] %v1247
        %1303 = vst [vmem:[%s1295 + $0x38] sm:$0xff] %v1252
        %1304 = vst [vmem:[%s1295 + $0x40] sm:$0xff] %v1257
        %1305 = vst [vmem:[%s1295 + $0x48] sm:$0xff] %v1262
        %1306 = vst [vmem:[%s1295 + $0x50] sm:$0xff] %v1267
        %1307 = vst [vmem:[%s1295 + $0x58] sm:$0xff] %v1272
        %1308 = vst [vmem:[%s1295 + $0x60] sm:$0xff] %v1277
        %1309 = vst [vmem:[%s1295 + $0x68] sm:$0xff] %v1282
        %1310 = vst [vmem:[%s1295 + $0x70] sm:$0xff] %v1287
        %1311 = vst [vmem:[%s1295 + $0x78] sm:$0xff] %v1292
        %s1312 = sand.u32 %s105, 1
        %s1313 = scalar_lea.sflag [#allocation6], %s1312
        %s1314 = sand.u32 %s105, 1
        %s1315 = smul.addr %s1314, 256
        %s1316 = scalar_lea.vmem [#allocation9], %s1315
        // Predicated region
        $region57: #{tpu_custom_call.1} parent=31 // pred_check
          %p1317 = pneg %p115
        $region58: #{tpu_custom_call.1} parent=31 // pred_check_branch
          %1319 = sbr.rel (%p1317) target = $region60
        $region59: #{tpu_custom_call.1} parent=31 // pred_region
          %s1320 = smul.u32 16, %s25
          %s1322 = ssub.s32 4096, 4096
          %1323 = vsyncadd %s1313, %s1322
          %s1324 = smul.addr %s1320, 2
          %s1325 = smul.addr %s24, 32
          %s1326 = sadd.s32 %s1324, %s1325
          %s1327 = smul.addr %s1326, 128
          %s1328 = scalar_lea.hbm %s4, %s1327
          %s1329 = sshll.u32 %s1316, 4
          %s1330 = int_to_ptr.vmem [resolvable:$true] %s1329
          %1335 = dma.vmem_to_hbm [thread:$0]  %s1330, 4096, %s1328, %s1313, 128, 128, 8
        $region60: #{tpu_custom_call.1} parent=31 // pred_fallthru
          _
      $region32: #{tpu_custom_call.1} parent=5 // pred_fallthru
        _
      %p1336 = scmp.le.s32.totalorder 2, %s15
      // Predicated region
      $region61: #{tpu_custom_call.1} parent=5 // pred_check
        %p1337 = pneg %p1336
      $region62: #{tpu_custom_call.1} parent=5 // pred_check_branch
        %1339 = sbr.rel (%p1337) target = $region64
      $region63: #{tpu_custom_call.1} parent=5 // pred_region
        %s1340 = ssub.s32 %s15, 2
        // Predicated region
        $region65: #{tpu_custom_call.1} parent=63 // pred_check
          %p1341 = pneg %p121
        $region66: #{tpu_custom_call.1} parent=63 // pred_check_branch
          %1343 = sbr.rel (%p1341) target = $region68
        $region67: #{tpu_custom_call.1} parent=63 // pred_region
          %s1344 = sand.u32 %s106, 1
          %s1345 = scalar_lea.sflag [#allocation6], %s1344
          %s1346 = sand.u32 %s106, 1
          %s1347 = smul.addr %s1346, 256
          %s1348 = scalar_lea.vmem [#allocation9], %s1347
          %1349 = dma.done %s1345, 4096
        $region68: #{tpu_custom_call.1} parent=63 // pred_fallthru
          _
      $region64: #{tpu_custom_call.1} parent=5 // pred_fallthru
        _
    $region6: #{tpu_custom_call.1} parent=1 // loop_footer
      %s19 = sadd.s32 1, %s15
    $region7: #{tpu_custom_call.1} parent=1 // loop_footer_branch
      %14 = sbr.rel target = $region3
    $region8: #{tpu_custom_call.1} parent=1 // loop_exit
      _
    %1350 = vsyncpa [#allocation5], 1
    %s1351 = scalar_lea.sflag [#allocation5], 1
    %1352 = vsyncpa %s1351, 1
    %1353 = vsyncpa [#allocation8], 1
    %1354 = vsyncpa [#allocation6], 1
    %s1355 = scalar_lea.sflag [#allocation6], 1
    %1356 = vsyncpa %s1355, 1
  %1357 = vsyncmov [#allocation3]
  %s1358 = vpop.sfrf %1357
  %p1359 = scmp.eq.s32.totalorder %s1358, 0
  %p1360 = pneg %p1359
  %1362 = shalt.err (%p1360)
  %s1363 = scalar_lea.sflag [#allocation3], 1
  %1364 = vsyncmov %s1363
  %s1365 = vpop.sfrf %1364
  %p1366 = scmp.eq.s32.totalorder %s1365, 0
  %p1367 = pneg %p1366
  %1369 = shalt.err (%p1367)

</llo_original>
